<compile_context>
chip_gen: v5e
topology: v5e:2x2
jax: 0.10.0
libtpu: 0.0.40
codegen_flags: <defaults>
</compile_context>

<pallas_src>
import functools

import jax
import jax.numpy as jnp
from jax.experimental import pallas as pl
from jax.experimental.pallas import tpu as pltpu


def _round_up(x, m):
    return (x + m - 1) // m * m


# -----------------------------------------------------------------------------
# Kernel
# -----------------------------------------------------------------------------
def _deformation_kernel(n_half, ch_pos_p, ch_time_p, approx_recip,
                        in_ref, w0_ref, b0_ref, awt_ref, abt_ref, aws_ref,
                        abs_ref, wmid_ref, bmid_ref, wlast_ref, blast_ref,
                        out_ref):
    n_layers = 2 * n_half
    n_dim = w0_ref.shape[0]
    inv_n = 1.0 / n_dim
    inv_nm1 = 1.0 / (n_dim - 1)

    # Sublane-aligned static slices of the fused feature-major input tile.
    xin = in_ref[0:ch_pos_p, :]                                    # (ch_pos_p, T)
    tin = in_ref[ch_pos_p:ch_pos_p + ch_time_p, :]                 # (ch_time_p, T)
    sin = in_ref[ch_pos_p + ch_time_p:ch_pos_p + 2 * ch_time_p, :]

    def mm(w_ref, act, b_ref):
        # Feature-major matmul: (out, in) @ (in, T) + (out, 1).  Activations are
        # cast to the pre-prepared weight dtype; accumulation stays f32.
        w = w_ref[...]
        return (jnp.dot(w, act.astype(w.dtype),
                        preferred_element_type=jnp.float32) + b_ref[...])

    # Hoisted AdaIN style projections: one small matmul per conditioner per
    # tile; rows 2j / 2j+1 hold (scale, shift) sources for layer j.
    style_t = mm(awt_ref, tin, abt_ref)          # (2*n_half, T) f32
    style_s = mm(aws_ref, sin, abs_ref)

    # Start linear (kept f32).
    out = mm(w0_ref, xin, b0_ref)                # (n_dim, T) f32

    for i in range(n_layers):
        style = style_t if i < n_half else style_s
        j = i if i < n_half else i - n_half
        s0 = style[2 * j:2 * j + 1, :]           # (1, T)
        s1 = style[2 * j + 1:2 * j + 2, :]       # (1, T)

        # ReLU
        out = jnp.maximum(out, 0.0)

        # AdaIN with torch semantics (unbiased std, eps added to std).
        # Exact two-pass statistics; the centered tensor feeds the affine step.
        mean = jnp.sum(out, axis=0, keepdims=True) * inv_n
        centered = out - mean
        var = jnp.sum(centered * centered, axis=0, keepdims=True) * inv_nm1
        std = jnp.sqrt(var) + 1e-6
        if approx_recip:
            inv_std = pl.reciprocal(std, approx=True)   # EUP slot, ~free
        else:
            inv_std = 1.0 / std
        out = centered * (s0 * inv_std) + s1

        # Linear
        if i < n_layers - 1:
            w = wmid_ref[i]                      # (n_dim, n_dim), static index
            out = (jnp.dot(w, out.astype(w.dtype),
                           preferred_element_type=jnp.float32) + bmid_ref[i])
        else:
            out = mm(wlast_ref, out, blast_ref)  # (4, T)

    # Single merged lane-dense store; sigmoid only on the occupancy row.
    out_ref[...] = jnp.concatenate(
        [out[0:3, :], jax.nn.sigmoid(out[3:4, :])], axis=0)


# -----------------------------------------------------------------------------
# One-time parameter preparation (transpose / pad / stack / cast)
# -----------------------------------------------------------------------------
def prepare_params(params, *, n_layer, matmul_dtype=jnp.bfloat16):
    assert n_layer % 2 == 0, "forward consumes 2*(n_layer//2) layers; use even n_layer"
    n_half = n_layer // 2
    n_total = 2 * n_half

    w_start = params["w_start"]                  # (ch_pos, n_dim)
    ch_pos, n_dim = w_start.shape
    ch_time = params["adain_w"][0].shape[0]
    ch_pos_p = _round_up(ch_pos, 8)
    ch_time_p = _round_up(ch_time, 8)

    def pad_in(w, in_p):                         # w: (out, in) -> pad "in" cols
        return jnp.pad(w, ((0, 0), (0, in_p - w.shape[1])))

    # First-layer / style weights kept f32 (input precision).
    w0 = pad_in(w_start.T, ch_pos_p)                         # (n_dim, ch_pos_p)
    b0 = params["b_start"].T                                  # (n_dim, 1)

    awt = pad_in(jnp.concatenate(
        [params["adain_w"][i].T for i in range(n_half)], axis=0), ch_time_p)
    abt = jnp.concatenate([params["adain_b"][i].T for i in range(n_half)], axis=0)
    aws = pad_in(jnp.concatenate(
        [params["adain_w"][i].T for i in range(n_half, n_total)], axis=0), ch_time_p)
    abs_ = jnp.concatenate(
        [params["adain_b"][i].T for i in range(n_half, n_total)], axis=0)

    # Hidden layers stacked into single refs; pre-cast once to matmul dtype.
    w_mid = jnp.stack([params["w"][i].T for i in range(n_total - 1)]
                      ).astype(matmul_dtype)                  # (n_total-1, n_dim, n_dim)
    b_mid = jnp.stack([params["b"][i].T for i in range(n_total - 1)])  # (.., n_dim, 1)
    w_last = params["w"][n_total - 1].T.astype(matmul_dtype)  # (4, n_dim)
    b_last = params["b"][n_total - 1].T                       # (4, 1)

    return {"w0": w0, "b0": b0, "awt": awt, "abt": abt, "aws": aws, "abs": abs_,
            "w_mid": w_mid, "b_mid": b_mid, "w_last": w_last, "b_last": b_last,
            "meta": {"n_half": n_half, "n_dim": n_dim, "ch_pos": ch_pos,
                     "ch_time": ch_time, "ch_pos_p": ch_pos_p,
                     "ch_time_p": ch_time_p}}


# -----------------------------------------------------------------------------
# Forward wrapper
# -----------------------------------------------------------------------------
def deformation_net_forward(x, t, s, prep, *, tile_n=2048, approx_recip=True):
    """x: (N, ch_pos), t: (N, ch_time), s: (N, ch_time) -> ((N, 3), (N, 1))."""
    meta = prep["meta"]
    n_half = meta["n_half"]
    ch_pos, ch_time = meta["ch_pos"], meta["ch_time"]
    ch_pos_p, ch_time_p = meta["ch_pos_p"], meta["ch_time_p"]

    N = x.shape[0]
    assert x.shape[1] == ch_pos and t.shape[1] == ch_time and s.shape[1] == ch_time

    # Lane tile: multiple of 128, no larger than the (128-rounded) problem.
    tile_n = max(128, _round_up(int(tile_n), 128))
    tile_n = min(tile_n, _round_up(N, 128))
    n_pad = _round_up(N, tile_n)

    # Fused feature-major input (C_total, n_pad).  The transpose is the only
    # HBM rewrite of the inputs; group/tail zero-padding fuses into it.
    def fm(a, c_p):
        return jnp.pad(a, ((0, n_pad - N), (0, c_p - a.shape[1]))).T

    xin = jnp.concatenate([fm(x, ch_pos_p), fm(t, ch_time_p), fm(s, ch_time_p)],
                          axis=0)
    c_total = ch_pos_p + 2 * ch_time_p

    inputs = [xin, prep["w0"], prep["b0"], prep["awt"], prep["abt"],
              prep["aws"], prep["abs"], prep["w_mid"], prep["b_mid"],
              prep["w_last"], prep["b_last"]]

    def full_spec(a):
        nd = a.ndim
        return pl.BlockSpec(a.shape, lambda i, _nd=nd: (0,) * _nd)

    in_specs = [pl.BlockSpec((c_total, tile_n), lambda i: (0, i))]
    in_specs += [full_spec(a) for a in inputs[1:]]
    out_specs = pl.BlockSpec((4, tile_n), lambda i: (0, i))

    kernel = functools.partial(_deformation_kernel, n_half, ch_pos_p, ch_time_p,
                               approx_recip)

    out4 = pl.pallas_call(
        kernel,
        out_shape=jax.ShapeDtypeStruct((4, n_pad), jnp.float32),
        grid_spec=pltpu.PrefetchScalarGridSpec(
            num_scalar_prefetch=0,
            grid=(n_pad // tile_n,),
            in_specs=in_specs,
            out_specs=out_specs,
        ),
        compiler_params=pltpu.CompilerParams(
            dimension_semantics=("parallel",)),
    )(*inputs)

    out4 = out4[:, :N]
    return out4[0:3, :].T, out4[3:4, :].T


# -----------------------------------------------------------------------------
# Deterministic parameter init (mimics torch.nn.Linear default uniform init)
# -----------------------------------------------------------------------------
def init_params(key, ch_pos, ch_time, n_dim, n_layer):
    def linear(k, fan_in, fan_out):
        kw, kb = jax.random.split(k)
        bound = 1.0 / jnp.sqrt(fan_in)
        w = jax.random.uniform(kw, (fan_in, fan_out), jnp.float32, -bound, bound)
        b = jax.random.uniform(kb, (1, fan_out), jnp.float32, -bound, bound)
        return w, b

    keys = jax.random.split(key, 1 + 2 * n_layer)
    w_start, b_start = linear(keys[0], ch_pos, n_dim)

    ws, bs, aws, abs_ = [], [], [], []
    for i in range(n_layer):
        out_dim = n_dim if i < n_layer - 1 else 4
        w, b = linear(keys[1 + i], n_dim, out_dim)
        aw, ab = linear(keys[1 + n_layer + i], ch_time, 2)
        ws.append(w); bs.append(b); aws.append(aw); abs_.append(ab)

    return {"w_start": w_start, "b_start": b_start,
            "w": ws, "b": bs, "adain_w": aws, "adain_b": abs_}


# -----------------------------------------------------------------------------
# Pure-JAX reference (torch semantics, f32) for verification
# -----------------------------------------------------------------------------
def reference_forward(x, t, s, params, *, n_layer, n_dim):
    n_half = n_layer // 2
    out = x @ params["w_start"] + params["b_start"]
    for i in range(2 * n_half):
        cond = t if i < n_half else s
        out = jnp.maximum(out, 0.0)
        style = cond @ params["adain_w"][i] + params["adain_b"][i]
        mean = jnp.mean(out, axis=-1, keepdims=True)
        var = jnp.sum((out - mean) ** 2, axis=-1, keepdims=True) / (n_dim - 1)
        std = jnp.sqrt(var) + 1e-6
        out = (out - mean) / std * style[:, 0:1] + style[:, 1:2]
        out = out @ params["w"][i] + params["b"][i]
    return out[:, :3], jax.nn.sigmoid(out[:, 3:4])


# -----------------------------------------------------------------------------
if __name__ == "__main__":
    # Small, forward-consistent shapes; N deliberately not a multiple of 128.
    N, ch_pos, ch_time, n_dim, n_layer = 300, 8, 6, 32, 4

    key = jax.random.PRNGKey(0)
    kx, kt, ks, kp = jax.random.split(key, 4)
    x = jax.random.normal(kx, (N, ch_pos), jnp.float32)
    t = jax.random.normal(kt, (N, ch_time), jnp.float32)
    s = jax.random.normal(ks, (N, ch_time), jnp.float32)
    params = init_params(kp, ch_pos, ch_time, n_dim, n_layer)

    ref3, ref_occ = reference_forward(x, t, s, params, n_layer=n_layer, n_dim=n_dim)

    # 1) Validation configuration: f32 weights everywhere, exact reciprocal.
    prep32 = prepare_params(params, n_layer=n_layer, matmul_dtype=jnp.float32)
    out3, occ = deformation_net_forward(x, t, s, prep32, approx_recip=False)
    out3, occ = jax.block_until_ready((out3, occ))
    assert out3.shape == (N, 3) and occ.shape == (N, 1)
    assert jnp.allclose(out3, ref3, atol=1e-3, rtol=1e-3)
    assert jnp.allclose(occ, ref_occ, atol=1e-3, rtol=1e-3)

    # 2) Fast (default) configuration: bf16 hidden-layer weights + approx recip.
    prep16 = prepare_params(params, n_layer=n_layer)
    out3f, occf = deformation_net_forward(x, t, s, prep16)
    out3f, occf = jax.block_until_ready((out3f, occf))
    assert out3f.shape == (N, 3) and occf.shape == (N, 1)
    assert jnp.allclose(out3f, ref3, atol=5e-2, rtol=5e-2)
    assert jnp.allclose(occf, ref_occ, atol=5e-2, rtol=5e-2)

    print("KERNEL_OK")
</pallas_src>

<mosaic_0001>
module attributes {stable_mosaic.version = 11 : i64} {
  func.func @_deformation_kernel(%arg0: i32, %arg1: memref<24x384xf32, #tpu.memory_space<vmem>>, %arg2: memref<32x8xf32, #tpu.memory_space<vmem>>, %arg3: memref<32x1xf32, #tpu.memory_space<vmem>>, %arg4: memref<4x8xf32, #tpu.memory_space<vmem>>, %arg5: memref<4x1xf32, #tpu.memory_space<vmem>>, %arg6: memref<4x8xf32, #tpu.memory_space<vmem>>, %arg7: memref<4x1xf32, #tpu.memory_space<vmem>>, %arg8: memref<3x32x32xf32, #tpu.memory_space<vmem>>, %arg9: memref<3x32x1xf32, #tpu.memory_space<vmem>>, %arg10: memref<4x32xf32, #tpu.memory_space<vmem>>, %arg11: memref<4x1xf32, #tpu.memory_space<vmem>>, %arg12: memref<4x384xf32, #tpu.memory_space<vmem>>) attributes {dimension_semantics = [#tpu.dimension_semantics<parallel>], iteration_bounds = array<i64: 1>, scalar_prefetch = 0 : i64, scratch_operands = 0 : i64, tpu.core_type = #tpu.core_type<tc>, window_params = [{transform_indices = @transform_0, window_bounds = array<i64: 24, 384>}, {pipeline_mode = #tpu.pipeline_mode<synchronous>, transform_indices = @transform_1, window_bounds = array<i64: 32, 8>}, {pipeline_mode = #tpu.pipeline_mode<synchronous>, transform_indices = @transform_2, window_bounds = array<i64: 32, 1>}, {pipeline_mode = #tpu.pipeline_mode<synchronous>, transform_indices = @transform_3, window_bounds = array<i64: 4, 8>}, {pipeline_mode = #tpu.pipeline_mode<synchronous>, transform_indices = @transform_4, window_bounds = array<i64: 4, 1>}, {pipeline_mode = #tpu.pipeline_mode<synchronous>, transform_indices = @transform_5, window_bounds = array<i64: 4, 8>}, {pipeline_mode = #tpu.pipeline_mode<synchronous>, transform_indices = @transform_6, window_bounds = array<i64: 4, 1>}, {pipeline_mode = #tpu.pipeline_mode<synchronous>, transform_indices = @transform_7, window_bounds = array<i64: 3, 32, 32>}, {pipeline_mode = #tpu.pipeline_mode<synchronous>, transform_indices = @transform_8, window_bounds = array<i64: 3, 32, 1>}, {pipeline_mode = #tpu.pipeline_mode<synchronous>, transform_indices = @transform_9, window_bounds = array<i64: 4, 32>}, {pipeline_mode = #tpu.pipeline_mode<synchronous>, transform_indices = @transform_10, window_bounds = array<i64: 4, 1>}, {transform_indices = @transform_11, window_bounds = array<i64: 4, 384>}]} {
    %c0 = arith.constant 0 : index
    %c0_0 = arith.constant 0 : index
    %0 = vector.load %arg1[%c0, %c0_0] : memref<24x384xf32, #tpu.memory_space<vmem>>, vector<8x384xf32>
    %c8 = arith.constant 8 : index
    %c0_1 = arith.constant 0 : index
    %1 = vector.load %arg1[%c8, %c0_1] : memref<24x384xf32, #tpu.memory_space<vmem>>, vector<8x384xf32>
    %c16 = arith.constant 16 : index
    %c0_2 = arith.constant 0 : index
    %2 = vector.load %arg1[%c16, %c0_2] : memref<24x384xf32, #tpu.memory_space<vmem>>, vector<8x384xf32>
    %c0_3 = arith.constant 0 : index
    %c0_4 = arith.constant 0 : index
    %3 = vector.load %arg4[%c0_3, %c0_4] : memref<4x8xf32, #tpu.memory_space<vmem>>, vector<4x8xf32>
    %cst = arith.constant dense<0.000000e+00> : vector<4x384xf32>
    %4 = tpu.matmul %3, %1, %cst {dimension_numbers = #tpu.dot_dimension_numbers<[1], [0], [0], [1], [0, 0, 1, 1], [], []>} : vector<4x8xf32>, vector<8x384xf32>, vector<4x384xf32> -> vector<4x384xf32>
    %c0_5 = arith.constant 0 : index
    %c0_6 = arith.constant 0 : index
    %5 = vector.load %arg5[%c0_5, %c0_6] : memref<4x1xf32, #tpu.memory_space<vmem>>, vector<4x1xf32>
    %6 = vector.broadcast %5 : vector<4x1xf32> to vector<4x384xf32>
    %7 = arith.addf %4, %6 : vector<4x384xf32>
    %c0_7 = arith.constant 0 : index
    %c0_8 = arith.constant 0 : index
    %8 = vector.load %arg6[%c0_7, %c0_8] : memref<4x8xf32, #tpu.memory_space<vmem>>, vector<4x8xf32>
    %cst_9 = arith.constant dense<0.000000e+00> : vector<4x384xf32>
    %9 = tpu.matmul %8, %2, %cst_9 {dimension_numbers = #tpu.dot_dimension_numbers<[1], [0], [0], [1], [0, 0, 1, 1], [], []>} : vector<4x8xf32>, vector<8x384xf32>, vector<4x384xf32> -> vector<4x384xf32>
    %c0_10 = arith.constant 0 : index
    %c0_11 = arith.constant 0 : index
    %10 = vector.load %arg7[%c0_10, %c0_11] : memref<4x1xf32, #tpu.memory_space<vmem>>, vector<4x1xf32>
    %11 = vector.broadcast %10 : vector<4x1xf32> to vector<4x384xf32>
    %12 = arith.addf %9, %11 : vector<4x384xf32>
    %c0_12 = arith.constant 0 : index
    %c0_13 = arith.constant 0 : index
    %13 = vector.load %arg2[%c0_12, %c0_13] : memref<32x8xf32, #tpu.memory_space<vmem>>, vector<32x8xf32>
    %cst_14 = arith.constant dense<0.000000e+00> : vector<32x384xf32>
    %14 = tpu.matmul %13, %0, %cst_14 {dimension_numbers = #tpu.dot_dimension_numbers<[1], [0], [0], [1], [0, 0, 1, 1], [], []>} : vector<32x8xf32>, vector<8x384xf32>, vector<32x384xf32> -> vector<32x384xf32>
    %c0_15 = arith.constant 0 : index
    %c0_16 = arith.constant 0 : index
    %15 = vector.load %arg3[%c0_15, %c0_16] : memref<32x1xf32, #tpu.memory_space<vmem>>, vector<32x1xf32>
    %16 = vector.broadcast %15 : vector<32x1xf32> to vector<32x384xf32>
    %17 = arith.addf %14, %16 : vector<32x384xf32>
    %18 = vector.extract_strided_slice %7 {offsets = [0, 0], sizes = [1, 384], strides = [1, 1]} : vector<4x384xf32> to vector<1x384xf32>
    %19 = vector.extract_strided_slice %7 {offsets = [1, 0], sizes = [1, 384], strides = [1, 1]} : vector<4x384xf32> to vector<1x384xf32>
    %cst_17 = arith.constant 0.000000e+00 : f32
    %20 = vector.broadcast %cst_17 : f32 to vector<32x384xf32>
    %21 = arith.maximumf %17, %20 : vector<32x384xf32>
    %cst_18 = arith.constant dense<0.000000e+00> : vector<384xf32>
    %22 = vector.multi_reduction <add>, %21, %cst_18 [0] : vector<32x384xf32> to vector<384xf32>
    %23 = vector.shape_cast %22 : vector<384xf32> to vector<1x384xf32>
    %cst_19 = arith.constant 3.125000e-02 : f32
    %24 = vector.broadcast %cst_19 : f32 to vector<1x384xf32>
    %25 = arith.mulf %23, %24 : vector<1x384xf32>
    %26 = vector.broadcast %25 : vector<1x384xf32> to vector<32x384xf32>
    %27 = arith.subf %21, %26 : vector<32x384xf32>
    %28 = arith.mulf %27, %27 : vector<32x384xf32>
    %cst_20 = arith.constant dense<0.000000e+00> : vector<384xf32>
    %29 = vector.multi_reduction <add>, %28, %cst_20 [0] : vector<32x384xf32> to vector<384xf32>
    %30 = vector.shape_cast %29 : vector<384xf32> to vector<1x384xf32>
    %cst_21 = arith.constant 0.0322580636 : f32
    %31 = vector.broadcast %cst_21 : f32 to vector<1x384xf32>
    %32 = arith.mulf %30, %31 : vector<1x384xf32>
    %33 = math.sqrt %32 : vector<1x384xf32>
    %cst_22 = arith.constant 9.99999997E-7 : f32
    %34 = vector.broadcast %cst_22 : f32 to vector<1x384xf32>
    %35 = arith.addf %33, %34 : vector<1x384xf32>
    %cst_23 = arith.constant 1.000000e+00 : f32
    %36 = vector.broadcast %cst_23 : f32 to vector<1x384xf32>
    %37 = arith.divf %36, %35 : vector<1x384xf32>
    %38 = arith.mulf %18, %37 : vector<1x384xf32>
    %39 = vector.broadcast %38 : vector<1x384xf32> to vector<32x384xf32>
    %40 = arith.mulf %27, %39 : vector<32x384xf32>
    %41 = vector.broadcast %19 : vector<1x384xf32> to vector<32x384xf32>
    %42 = arith.addf %40, %41 : vector<32x384xf32>
    %c0_24 = arith.constant 0 : index
    %c0_25 = arith.constant 0 : index
    %c0_26 = arith.constant 0 : index
    %43 = vector.load %arg8[%c0_24, %c0_25, %c0_26] : memref<3x32x32xf32, #tpu.memory_space<vmem>>, vector<1x32x32xf32>
    %44 = vector.shape_cast %43 : vector<1x32x32xf32> to vector<32x32xf32>
    %cst_27 = arith.constant dense<0.000000e+00> : vector<32x384xf32>
    %45 = tpu.matmul %44, %42, %cst_27 {dimension_numbers = #tpu.dot_dimension_numbers<[1], [0], [0], [1], [0, 0, 1, 1], [], []>} : vector<32x32xf32>, vector<32x384xf32>, vector<32x384xf32> -> vector<32x384xf32>
    %c0_28 = arith.constant 0 : index
    %c0_29 = arith.constant 0 : index
    %c0_30 = arith.constant 0 : index
    %46 = vector.load %arg9[%c0_28, %c0_29, %c0_30] : memref<3x32x1xf32, #tpu.memory_space<vmem>>, vector<1x32x1xf32>
    %47 = vector.shape_cast %46 : vector<1x32x1xf32> to vector<32x1xf32>
    %48 = vector.broadcast %47 : vector<32x1xf32> to vector<32x384xf32>
    %49 = arith.addf %45, %48 : vector<32x384xf32>
    %50 = vector.extract_strided_slice %7 {offsets = [2, 0], sizes = [1, 384], strides = [1, 1]} : vector<4x384xf32> to vector<1x384xf32>
    %51 = vector.extract_strided_slice %7 {offsets = [3, 0], sizes = [1, 384], strides = [1, 1]} : vector<4x384xf32> to vector<1x384xf32>
    %cst_31 = arith.constant 0.000000e+00 : f32
    %52 = vector.broadcast %cst_31 : f32 to vector<32x384xf32>
    %53 = arith.maximumf %49, %52 : vector<32x384xf32>
    %cst_32 = arith.constant dense<0.000000e+00> : vector<384xf32>
    %54 = vector.multi_reduction <add>, %53, %cst_32 [0] : vector<32x384xf32> to vector<384xf32>
    %55 = vector.shape_cast %54 : vector<384xf32> to vector<1x384xf32>
    %cst_33 = arith.constant 3.125000e-02 : f32
    %56 = vector.broadcast %cst_33 : f32 to vector<1x384xf32>
    %57 = arith.mulf %55, %56 : vector<1x384xf32>
    %58 = vector.broadcast %57 : vector<1x384xf32> to vector<32x384xf32>
    %59 = arith.subf %53, %58 : vector<32x384xf32>
    %60 = arith.mulf %59, %59 : vector<32x384xf32>
    %cst_34 = arith.constant dense<0.000000e+00> : vector<384xf32>
    %61 = vector.multi_reduction <add>, %60, %cst_34 [0] : vector<32x384xf32> to vector<384xf32>
    %62 = vector.shape_cast %61 : vector<384xf32> to vector<1x384xf32>
    %cst_35 = arith.constant 0.0322580636 : f32
    %63 = vector.broadcast %cst_35 : f32 to vector<1x384xf32>
    %64 = arith.mulf %62, %63 : vector<1x384xf32>
    %65 = math.sqrt %64 : vector<1x384xf32>
    %cst_36 = arith.constant 9.99999997E-7 : f32
    %66 = vector.broadcast %cst_36 : f32 to vector<1x384xf32>
    %67 = arith.addf %65, %66 : vector<1x384xf32>
    %cst_37 = arith.constant 1.000000e+00 : f32
    %68 = vector.broadcast %cst_37 : f32 to vector<1x384xf32>
    %69 = arith.divf %68, %67 : vector<1x384xf32>
    %70 = arith.mulf %50, %69 : vector<1x384xf32>
    %71 = vector.broadcast %70 : vector<1x384xf32> to vector<32x384xf32>
    %72 = arith.mulf %59, %71 : vector<32x384xf32>
    %73 = vector.broadcast %51 : vector<1x384xf32> to vector<32x384xf32>
    %74 = arith.addf %72, %73 : vector<32x384xf32>
    %c1 = arith.constant 1 : index
    %c0_38 = arith.constant 0 : index
    %c0_39 = arith.constant 0 : index
    %75 = vector.load %arg8[%c1, %c0_38, %c0_39] : memref<3x32x32xf32, #tpu.memory_space<vmem>>, vector<1x32x32xf32>
    %76 = vector.shape_cast %75 : vector<1x32x32xf32> to vector<32x32xf32>
    %cst_40 = arith.constant dense<0.000000e+00> : vector<32x384xf32>
    %77 = tpu.matmul %76, %74, %cst_40 {dimension_numbers = #tpu.dot_dimension_numbers<[1], [0], [0], [1], [0, 0, 1, 1], [], []>} : vector<32x32xf32>, vector<32x384xf32>, vector<32x384xf32> -> vector<32x384xf32>
    %c1_41 = arith.constant 1 : index
    %c0_42 = arith.constant 0 : index
    %c0_43 = arith.constant 0 : index
    %78 = vector.load %arg9[%c1_41, %c0_42, %c0_43] : memref<3x32x1xf32, #tpu.memory_space<vmem>>, vector<1x32x1xf32>
    %79 = vector.shape_cast %78 : vector<1x32x1xf32> to vector<32x1xf32>
    %80 = vector.broadcast %79 : vector<32x1xf32> to vector<32x384xf32>
    %81 = arith.addf %77, %80 : vector<32x384xf32>
    %82 = vector.extract_strided_slice %12 {offsets = [0, 0], sizes = [1, 384], strides = [1, 1]} : vector<4x384xf32> to vector<1x384xf32>
    %83 = vector.extract_strided_slice %12 {offsets = [1, 0], sizes = [1, 384], strides = [1, 1]} : vector<4x384xf32> to vector<1x384xf32>
    %cst_44 = arith.constant 0.000000e+00 : f32
    %84 = vector.broadcast %cst_44 : f32 to vector<32x384xf32>
    %85 = arith.maximumf %81, %84 : vector<32x384xf32>
    %cst_45 = arith.constant dense<0.000000e+00> : vector<384xf32>
    %86 = vector.multi_reduction <add>, %85, %cst_45 [0] : vector<32x384xf32> to vector<384xf32>
    %87 = vector.shape_cast %86 : vector<384xf32> to vector<1x384xf32>
    %cst_46 = arith.constant 3.125000e-02 : f32
    %88 = vector.broadcast %cst_46 : f32 to vector<1x384xf32>
    %89 = arith.mulf %87, %88 : vector<1x384xf32>
    %90 = vector.broadcast %89 : vector<1x384xf32> to vector<32x384xf32>
    %91 = arith.subf %85, %90 : vector<32x384xf32>
    %92 = arith.mulf %91, %91 : vector<32x384xf32>
    %cst_47 = arith.constant dense<0.000000e+00> : vector<384xf32>
    %93 = vector.multi_reduction <add>, %92, %cst_47 [0] : vector<32x384xf32> to vector<384xf32>
    %94 = vector.shape_cast %93 : vector<384xf32> to vector<1x384xf32>
    %cst_48 = arith.constant 0.0322580636 : f32
    %95 = vector.broadcast %cst_48 : f32 to vector<1x384xf32>
    %96 = arith.mulf %94, %95 : vector<1x384xf32>
    %97 = math.sqrt %96 : vector<1x384xf32>
    %cst_49 = arith.constant 9.99999997E-7 : f32
    %98 = vector.broadcast %cst_49 : f32 to vector<1x384xf32>
    %99 = arith.addf %97, %98 : vector<1x384xf32>
    %cst_50 = arith.constant 1.000000e+00 : f32
    %100 = vector.broadcast %cst_50 : f32 to vector<1x384xf32>
    %101 = arith.divf %100, %99 : vector<1x384xf32>
    %102 = arith.mulf %82, %101 : vector<1x384xf32>
    %103 = vector.broadcast %102 : vector<1x384xf32> to vector<32x384xf32>
    %104 = arith.mulf %91, %103 : vector<32x384xf32>
    %105 = vector.broadcast %83 : vector<1x384xf32> to vector<32x384xf32>
    %106 = arith.addf %104, %105 : vector<32x384xf32>
    %c2 = arith.constant 2 : index
    %c0_51 = arith.constant 0 : index
    %c0_52 = arith.constant 0 : index
    %107 = vector.load %arg8[%c2, %c0_51, %c0_52] : memref<3x32x32xf32, #tpu.memory_space<vmem>>, vector<1x32x32xf32>
    %108 = vector.shape_cast %107 : vector<1x32x32xf32> to vector<32x32xf32>
    %cst_53 = arith.constant dense<0.000000e+00> : vector<32x384xf32>
    %109 = tpu.matmul %108, %106, %cst_53 {dimension_numbers = #tpu.dot_dimension_numbers<[1], [0], [0], [1], [0, 0, 1, 1], [], []>} : vector<32x32xf32>, vector<32x384xf32>, vector<32x384xf32> -> vector<32x384xf32>
    %c2_54 = arith.constant 2 : index
    %c0_55 = arith.constant 0 : index
    %c0_56 = arith.constant 0 : index
    %110 = vector.load %arg9[%c2_54, %c0_55, %c0_56] : memref<3x32x1xf32, #tpu.memory_space<vmem>>, vector<1x32x1xf32>
    %111 = vector.shape_cast %110 : vector<1x32x1xf32> to vector<32x1xf32>
    %112 = vector.broadcast %111 : vector<32x1xf32> to vector<32x384xf32>
    %113 = arith.addf %109, %112 : vector<32x384xf32>
    %114 = vector.extract_strided_slice %12 {offsets = [2, 0], sizes = [1, 384], strides = [1, 1]} : vector<4x384xf32> to vector<1x384xf32>
    %115 = vector.extract_strided_slice %12 {offsets = [3, 0], sizes = [1, 384], strides = [1, 1]} : vector<4x384xf32> to vector<1x384xf32>
    %cst_57 = arith.constant 0.000000e+00 : f32
    %116 = vector.broadcast %cst_57 : f32 to vector<32x384xf32>
    %117 = arith.maximumf %113, %116 : vector<32x384xf32>
    %cst_58 = arith.constant dense<0.000000e+00> : vector<384xf32>
    %118 = vector.multi_reduction <add>, %117, %cst_58 [0] : vector<32x384xf32> to vector<384xf32>
    %119 = vector.shape_cast %118 : vector<384xf32> to vector<1x384xf32>
    %cst_59 = arith.constant 3.125000e-02 : f32
    %120 = vector.broadcast %cst_59 : f32 to vector<1x384xf32>
    %121 = arith.mulf %119, %120 : vector<1x384xf32>
    %122 = vector.broadcast %121 : vector<1x384xf32> to vector<32x384xf32>
    %123 = arith.subf %117, %122 : vector<32x384xf32>
    %124 = arith.mulf %123, %123 : vector<32x384xf32>
    %cst_60 = arith.constant dense<0.000000e+00> : vector<384xf32>
    %125 = vector.multi_reduction <add>, %124, %cst_60 [0] : vector<32x384xf32> to vector<384xf32>
    %126 = vector.shape_cast %125 : vector<384xf32> to vector<1x384xf32>
    %cst_61 = arith.constant 0.0322580636 : f32
    %127 = vector.broadcast %cst_61 : f32 to vector<1x384xf32>
    %128 = arith.mulf %126, %127 : vector<1x384xf32>
    %129 = math.sqrt %128 : vector<1x384xf32>
    %cst_62 = arith.constant 9.99999997E-7 : f32
    %130 = vector.broadcast %cst_62 : f32 to vector<1x384xf32>
    %131 = arith.addf %129, %130 : vector<1x384xf32>
    %cst_63 = arith.constant 1.000000e+00 : f32
    %132 = vector.broadcast %cst_63 : f32 to vector<1x384xf32>
    %133 = arith.divf %132, %131 : vector<1x384xf32>
    %134 = arith.mulf %114, %133 : vector<1x384xf32>
    %135 = vector.broadcast %134 : vector<1x384xf32> to vector<32x384xf32>
    %136 = arith.mulf %123, %135 : vector<32x384xf32>
    %137 = vector.broadcast %115 : vector<1x384xf32> to vector<32x384xf32>
    %138 = arith.addf %136, %137 : vector<32x384xf32>
    %c0_64 = arith.constant 0 : index
    %c0_65 = arith.constant 0 : index
    %139 = vector.load %arg10[%c0_64, %c0_65] : memref<4x32xf32, #tpu.memory_space<vmem>>, vector<4x32xf32>
    %cst_66 = arith.constant dense<0.000000e+00> : vector<4x384xf32>
    %140 = tpu.matmul %139, %138, %cst_66 {dimension_numbers = #tpu.dot_dimension_numbers<[1], [0], [0], [1], [0, 0, 1, 1], [], []>} : vector<4x32xf32>, vector<32x384xf32>, vector<4x384xf32> -> vector<4x384xf32>
    %c0_67 = arith.constant 0 : index
    %c0_68 = arith.constant 0 : index
    %141 = vector.load %arg11[%c0_67, %c0_68] : memref<4x1xf32, #tpu.memory_space<vmem>>, vector<4x1xf32>
    %142 = vector.broadcast %141 : vector<4x1xf32> to vector<4x384xf32>
    %143 = arith.addf %140, %142 : vector<4x384xf32>
    %144 = vector.extract_strided_slice %143 {offsets = [0, 0], sizes = [3, 384], strides = [1, 1]} : vector<4x384xf32> to vector<3x384xf32>
    %145 = vector.extract_strided_slice %143 {offsets = [3, 0], sizes = [1, 384], strides = [1, 1]} : vector<4x384xf32> to vector<1x384xf32>
    %146 = arith.negf %145 : vector<1x384xf32>
    %147 = math.exp %146 : vector<1x384xf32>
    %cst_69 = arith.constant 1.000000e+00 : f32
    %148 = vector.broadcast %cst_69 : f32 to vector<1x384xf32>
    %149 = arith.addf %148, %147 : vector<1x384xf32>
    %150 = arith.divf %148, %149 : vector<1x384xf32>
    %151 = tpu.concatenate %144, %150 in 0 : vector<3x384xf32>, vector<1x384xf32> -> vector<4x384xf32>
    %c0_70 = arith.constant 0 : index
    %c0_71 = arith.constant 0 : index
    %152 = vector.load %arg12[%c0_70, %c0_71] : memref<4x384xf32, #tpu.memory_space<vmem>>, vector<4x384xf32>
    tpu.vector_store %arg12[%c0_70, %c0_71], %151 {strides = array<i32>} : memref<4x384xf32, #tpu.memory_space<vmem>>, vector<4x384xf32>,
    return
  }
  func.func @transform_0(%arg0: i32) -> (i32, i32) {
    %c0_i32 = arith.constant 0 : i32
    %c0_i32_0 = arith.constant 0 : i32
    return %c0_i32, %arg0 : i32, i32
  }
  func.func @transform_1(%arg0: i32) -> (i32, i32) {
    %c0_i32 = arith.constant 0 : i32
    %c0_i32_0 = arith.constant 0 : i32
    %c0_i32_1 = arith.constant 0 : i32
    return %c0_i32, %c0_i32_0 : i32, i32
  }
  func.func @transform_2(%arg0: i32) -> (i32, i32) {
    %c0_i32 = arith.constant 0 : i32
    %c0_i32_0 = arith.constant 0 : i32
    %c0_i32_1 = arith.constant 0 : i32
    return %c0_i32, %c0_i32_0 : i32, i32
  }
  func.func @transform_3(%arg0: i32) -> (i32, i32) {
    %c0_i32 = arith.constant 0 : i32
    %c0_i32_0 = arith.constant 0 : i32
    %c0_i32_1 = arith.constant 0 : i32
    return %c0_i32, %c0_i32_0 : i32, i32
  }
  func.func @transform_4(%arg0: i32) -> (i32, i32) {
    %c0_i32 = arith.constant 0 : i32
    %c0_i32_0 = arith.constant 0 : i32
    %c0_i32_1 = arith.constant 0 : i32
    return %c0_i32, %c0_i32_0 : i32, i32
  }
  func.func @transform_5(%arg0: i32) -> (i32, i32) {
    %c0_i32 = arith.constant 0 : i32
    %c0_i32_0 = arith.constant 0 : i32
    %c0_i32_1 = arith.constant 0 : i32
    return %c0_i32, %c0_i32_0 : i32, i32
  }
  func.func @transform_6(%arg0: i32) -> (i32, i32) {
    %c0_i32 = arith.constant 0 : i32
    %c0_i32_0 = arith.constant 0 : i32
    %c0_i32_1 = arith.constant 0 : i32
    return %c0_i32, %c0_i32_0 : i32, i32
  }
  func.func @transform_7(%arg0: i32) -> (i32, i32, i32) {
    %c0_i32 = arith.constant 0 : i32
    %c0_i32_0 = arith.constant 0 : i32
    %c0_i32_1 = arith.constant 0 : i32
    %c0_i32_2 = arith.constant 0 : i32
    return %c0_i32, %c0_i32_0, %c0_i32_1 : i32, i32, i32
  }
  func.func @transform_8(%arg0: i32) -> (i32, i32, i32) {
    %c0_i32 = arith.constant 0 : i32
    %c0_i32_0 = arith.constant 0 : i32
    %c0_i32_1 = arith.constant 0 : i32
    %c0_i32_2 = arith.constant 0 : i32
    return %c0_i32, %c0_i32_0, %c0_i32_1 : i32, i32, i32
  }
  func.func @transform_9(%arg0: i32) -> (i32, i32) {
    %c0_i32 = arith.constant 0 : i32
    %c0_i32_0 = arith.constant 0 : i32
    %c0_i32_1 = arith.constant 0 : i32
    return %c0_i32, %c0_i32_0 : i32, i32
  }
  func.func @transform_10(%arg0: i32) -> (i32, i32) {
    %c0_i32 = arith.constant 0 : i32
    %c0_i32_0 = arith.constant 0 : i32
    %c0_i32_1 = arith.constant 0 : i32
    return %c0_i32, %c0_i32_0 : i32, i32
  }
  func.func @transform_11(%arg0: i32) -> (i32, i32) {
    %c0_i32 = arith.constant 0 : i32
    %c0_i32_0 = arith.constant 0 : i32
    return %c0_i32, %arg0 : i32, i32
  }
}

</mosaic_0001>

<llo_original>
// kernel: tpu_custom_call.1
$region0: #{tpu_custom_call.1}
  #allocation0 [shape = 'u32[]', space=smem, size = 0x4, offset = 0x4, fixed_abs, tag = 'smem constant byte address 0x4 - core index']
  #allocation1 [shape = 'u32[72,128]{1,0:T(1,128)}', space=vmem, size = 0x9000, scoped, tag = 'internal scratch']
  %s0 = inlined_call_operand.hbm [shape: f32[24,384], index: 0, kind: input, shape index: {}]
  %s1 = inlined_call_operand.vmem [shape: f32[32,8], index: 1, kind: input, shape index: {}]
  %s2 = inlined_call_operand.vmem [shape: f32[32,1], index: 2, kind: input, shape index: {}]
  %s3 = inlined_call_operand.vmem [shape: f32[4,8], index: 3, kind: input, shape index: {}]
  %s4 = inlined_call_operand.vmem [shape: f32[4,1], index: 4, kind: input, shape index: {}]
  %s5 = inlined_call_operand.vmem [shape: f32[4,8], index: 5, kind: input, shape index: {}]
  %s6 = inlined_call_operand.vmem [shape: f32[4,1], index: 6, kind: input, shape index: {}]
  %s7 = inlined_call_operand.vmem [shape: f32[3,32,32], index: 7, kind: input, shape index: {}]
  %s8 = inlined_call_operand.vmem [shape: f32[3,32,1], index: 8, kind: input, shape index: {}]
  %s9 = inlined_call_operand.vmem [shape: f32[4,32], index: 9, kind: input, shape index: {}]
  %s10 = inlined_call_operand.vmem [shape: f32[4,1], index: 10, kind: input, shape index: {}]
  %s11 = inlined_call_operand.hbm [shape: f32[4,384], index: 11, kind: output, shape index: {}]
  %s12 = sld [smem:[#allocation0]]
  $region58: #{tpu_custom_call.1} parent=0
    _
  %s14 = ssub.s32 1, %s12
  %s15 = scalar_select 0, %s14, %s12
  $region1: #{tpu_custom_call.1} parent=0
    #allocation2 [shape = 'u8[36864]{0}', space=vmem, size = 0x9000, scoped, tag = 'input window, operand 0, single buffered']
    #allocation3 [shape = 's32[1]{0}', space=sflag, size = 0x4, scoped, tag = 'scoped memory for tpu_custom_call.1']
    #allocation4 [shape = 's32[1]{0}', space=sflag, size = 0x4, scoped, tag = 'scoped memory for tpu_custom_call.1']
    #allocation5 [shape = 'u8[6144]{0}', space=vmem, size = 0x1800, scoped, tag = 'output window, operand 0, single buffered']
    %16 = vsyncpa [#allocation3], 0
    %17 = vsyncpa [#allocation4], 0
    // Predicated region
    $region2: #{tpu_custom_call.1} parent=1 // pred_check
      _
    $region3: #{tpu_custom_call.1} parent=1 // pred_check_branch
      %19 = sbr.rel (0) target = $region5
    $region4: #{tpu_custom_call.1} parent=1 // pred_region
      %21 = vsyncadd [#allocation3], 0
      %s22 = sshll.u32 %s0, 4
      %s23 = int_to_ptr.hbm [resolvable:$true] %s22
      %s24 = sshll.u32 [#allocation2], 4
      %s25 = int_to_ptr.vmem [resolvable:$true] %s24
      %30 = dma.hbm_to_vmem [thread:$0]  %s23, 1152, %s25, [#allocation3], 384, 384, 24
    $region5: #{tpu_custom_call.1} parent=1 // pred_fallthru
      _
    // Predicated region
    $region6: #{tpu_custom_call.1} parent=1 // pred_check
      _
    $region7: #{tpu_custom_call.1} parent=1 // pred_check_branch
      %32 = sbr.rel (0) target = $region9
    $region8: #{tpu_custom_call.1} parent=1 // pred_region
      _
    $region9: #{tpu_custom_call.1} parent=1 // pred_fallthru
      _
    // Predicated region
    $region10: #{tpu_custom_call.1} parent=1 // pred_check
      _
    $region11: #{tpu_custom_call.1} parent=1 // pred_check_branch
      %34 = sbr.rel (0) target = $region13
    $region12: #{tpu_custom_call.1} parent=1 // pred_region
      _
    $region13: #{tpu_custom_call.1} parent=1 // pred_fallthru
      _
    // Predicated region
    $region14: #{tpu_custom_call.1} parent=1 // pred_check
      _
    $region15: #{tpu_custom_call.1} parent=1 // pred_check_branch
      %36 = sbr.rel (0) target = $region17
    $region16: #{tpu_custom_call.1} parent=1 // pred_region
      _
    $region17: #{tpu_custom_call.1} parent=1 // pred_fallthru
      _
    // Predicated region
    $region18: #{tpu_custom_call.1} parent=1 // pred_check
      _
    $region19: #{tpu_custom_call.1} parent=1 // pred_check_branch
      %38 = sbr.rel (0) target = $region21
    $region20: #{tpu_custom_call.1} parent=1 // pred_region
      _
    $region21: #{tpu_custom_call.1} parent=1 // pred_fallthru
      _
    // Predicated region
    $region22: #{tpu_custom_call.1} parent=1 // pred_check
      _
    $region23: #{tpu_custom_call.1} parent=1 // pred_check_branch
      %40 = sbr.rel (0) target = $region25
    $region24: #{tpu_custom_call.1} parent=1 // pred_region
      _
    $region25: #{tpu_custom_call.1} parent=1 // pred_fallthru
      _
    // Predicated region
    $region26: #{tpu_custom_call.1} parent=1 // pred_check
      _
    $region27: #{tpu_custom_call.1} parent=1 // pred_check_branch
      %42 = sbr.rel (0) target = $region29
    $region28: #{tpu_custom_call.1} parent=1 // pred_region
      _
    $region29: #{tpu_custom_call.1} parent=1 // pred_fallthru
      _
    // Predicated region
    $region30: #{tpu_custom_call.1} parent=1 // pred_check
      _
    $region31: #{tpu_custom_call.1} parent=1 // pred_check_branch
      %44 = sbr.rel (0) target = $region33
    $region32: #{tpu_custom_call.1} parent=1 // pred_region
      _
    $region33: #{tpu_custom_call.1} parent=1 // pred_fallthru
      _
    // Predicated region
    $region34: #{tpu_custom_call.1} parent=1 // pred_check
      _
    $region35: #{tpu_custom_call.1} parent=1 // pred_check_branch
      %46 = sbr.rel (0) target = $region37
    $region36: #{tpu_custom_call.1} parent=1 // pred_region
      _
    $region37: #{tpu_custom_call.1} parent=1 // pred_fallthru
      _
    // Predicated region
    $region38: #{tpu_custom_call.1} parent=1 // pred_check
      _
    $region39: #{tpu_custom_call.1} parent=1 // pred_check_branch
      %48 = sbr.rel (0) target = $region41
    $region40: #{tpu_custom_call.1} parent=1 // pred_region
      _
    $region41: #{tpu_custom_call.1} parent=1 // pred_fallthru
      _
    // Predicated region
    $region42: #{tpu_custom_call.1} parent=1 // pred_check
      _
    $region43: #{tpu_custom_call.1} parent=1 // pred_check_branch
      %50 = sbr.rel (0) target = $region45
    $region44: #{tpu_custom_call.1} parent=1 // pred_region
      _
    $region45: #{tpu_custom_call.1} parent=1 // pred_fallthru
      _
    // Predicated region
    $region46: #{tpu_custom_call.1} parent=1 // pred_check
      _
    $region47: #{tpu_custom_call.1} parent=1 // pred_check_branch
      %52 = sbr.rel (0) target = $region49
    $region48: #{tpu_custom_call.1} parent=1 // pred_region
      %54 = dma.done [#allocation3], 1152
    $region49: #{tpu_custom_call.1} parent=1 // pred_fallthru
      _
    %v55 = vld [vmem:[#allocation2] sm:$0xff]
    %v56 = vld [vmem:[#allocation2 + $0x8] sm:$0xff]
    %v57 = vld [vmem:[#allocation2 + $0x10] sm:$0xff]
    %v58 = vld [vmem:[#allocation2 + $0x18] sm:$0xff]
    %v59 = vld [vmem:[#allocation2 + $0x20] sm:$0xff]
    %v60 = vld [vmem:[#allocation2 + $0x28] sm:$0xff]
    %v61 = vld [vmem:[#allocation2 + $0x30] sm:$0xff]
    %v62 = vld [vmem:[#allocation2 + $0x38] sm:$0xff]
    %v63 = vld [vmem:[#allocation2 + $0x40] sm:$0xff]
    %v64 = vld [vmem:[%s3] sm:$0xf]
    %v65 = vld [vmem:[%s4] sm:$0xf]
    %67 = vset.pattern.permute.xlu0 0
    %68 = vperm.xlu0 %67, %v65
    %v69 = vpop.permute.xlu0 %68
    %vm71 = vcmask 64512
    %v73 = vsel %vm71, %v64, 0
    %75 = vmatpush.msra.mxu0 0.0
    %76 = vmatpush.msra.mxu0 0.0
    %77 = vmatpush.msra.mxu0 0.0
    %78 = vmatpush.msra.mxu0 0.0
    %79 = vmatpush.msra.mxu0 0.0
    %80 = vmatpush.msra.mxu0 0.0
    %81 = vmatpush.msra.mxu0 0.0
    %82 = vmatpush.msra.mxu0 0.0
    %83 = vmatpush.msra.mxu0 0.0
    %84 = vmatpush.msra.mxu0 0.0
    %85 = vmatpush.msra.mxu0 0.0
    %86 = vmatpush.msra.mxu0 0.0
    %87 = vmatpush.msra.mxu0 0.0
    %88 = vmatpush.msra.mxu0 0.0
    %89 = vmatpush.msra.mxu0 0.0
    %90 = vmatpush.msra.mxu0 %v58
    %91 = vmatmul.f32.gmra.mxu0 %v73
    %v92 = vpop.f32.mrf.mxu0
    %v93 = vadd.f32 %v69, %v92
    %94 = vdwg.mxu0
    %95 = vmatpush.msra.mxu0 0.0
    %96 = vmatpush.msra.mxu0 0.0
    %97 = vmatpush.msra.mxu0 0.0
    %98 = vmatpush.msra.mxu0 0.0
    %99 = vmatpush.msra.mxu0 0.0
    %100 = vmatpush.msra.mxu0 0.0
    %101 = vmatpush.msra.mxu0 0.0
    %102 = vmatpush.msra.mxu0 0.0
    %103 = vmatpush.msra.mxu0 0.0
    %104 = vmatpush.msra.mxu0 0.0
    %105 = vmatpush.msra.mxu0 0.0
    %106 = vmatpush.msra.mxu0 0.0
    %107 = vmatpush.msra.mxu0 0.0
    %108 = vmatpush.msra.mxu0 0.0
    %109 = vmatpush.msra.mxu0 0.0
    %110 = vmatpush.msra.mxu0 %v59
    %111 = vmatmul.f32.gmra.mxu0 %v73
    %v112 = vpop.f32.mrf.mxu0
    %v113 = vadd.f32 %v69, %v112
    %114 = vdwg.mxu0
    %115 = vmatpush.msra.mxu0 0.0
    %116 = vmatpush.msra.mxu0 0.0
    %117 = vmatpush.msra.mxu0 0.0
    %118 = vmatpush.msra.mxu0 0.0
    %119 = vmatpush.msra.mxu0 0.0
    %120 = vmatpush.msra.mxu0 0.0
    %121 = vmatpush.msra.mxu0 0.0
    %122 = vmatpush.msra.mxu0 0.0
    %123 = vmatpush.msra.mxu0 0.0
    %124 = vmatpush.msra.mxu0 0.0
    %125 = vmatpush.msra.mxu0 0.0
    %126 = vmatpush.msra.mxu0 0.0
    %127 = vmatpush.msra.mxu0 0.0
    %128 = vmatpush.msra.mxu0 0.0
    %129 = vmatpush.msra.mxu0 0.0
    %130 = vmatpush.msra.mxu0 %v60
    %131 = vmatmul.f32.gmra.mxu0 %v73
    %v132 = vpop.f32.mrf.mxu0
    %v133 = vadd.f32 %v69, %v132
    %134 = vdwg.mxu0
    %v135 = vld [vmem:[%s5] sm:$0xf]
    %v136 = vld [vmem:[%s6] sm:$0xf]
    %138 = vset.pattern.permute.xlu0 0
    %139 = vperm.xlu0 %138, %v136
    %v140 = vpop.permute.xlu0 %139
    %v143 = vsel %vm71, %v135, 0
    %145 = vmatpush.msra.mxu0 0.0
    %146 = vmatpush.msra.mxu0 0.0
    %147 = vmatpush.msra.mxu0 0.0
    %148 = vmatpush.msra.mxu0 0.0
    %149 = vmatpush.msra.mxu0 0.0
    %150 = vmatpush.msra.mxu0 0.0
    %151 = vmatpush.msra.mxu0 0.0
    %152 = vmatpush.msra.mxu0 0.0
    %153 = vmatpush.msra.mxu0 0.0
    %154 = vmatpush.msra.mxu0 0.0
    %155 = vmatpush.msra.mxu0 0.0
    %156 = vmatpush.msra.mxu0 0.0
    %157 = vmatpush.msra.mxu0 0.0
    %158 = vmatpush.msra.mxu0 0.0
    %159 = vmatpush.msra.mxu0 0.0
    %160 = vmatpush.msra.mxu0 %v61
    %161 = vmatmul.f32.gmra.mxu0 %v143
    %v162 = vpop.f32.mrf.mxu0
    %v163 = vadd.f32 %v140, %v162
    %164 = vdwg.mxu0
    %165 = vmatpush.msra.mxu0 0.0
    %166 = vmatpush.msra.mxu0 0.0
    %167 = vmatpush.msra.mxu0 0.0
    %168 = vmatpush.msra.mxu0 0.0
    %169 = vmatpush.msra.mxu0 0.0
    %170 = vmatpush.msra.mxu0 0.0
    %171 = vmatpush.msra.mxu0 0.0
    %172 = vmatpush.msra.mxu0 0.0
    %173 = vmatpush.msra.mxu0 0.0
    %174 = vmatpush.msra.mxu0 0.0
    %175 = vmatpush.msra.mxu0 0.0
    %176 = vmatpush.msra.mxu0 0.0
    %177 = vmatpush.msra.mxu0 0.0
    %178 = vmatpush.msra.mxu0 0.0
    %179 = vmatpush.msra.mxu0 0.0
    %180 = vmatpush.msra.mxu0 %v62
    %181 = vmatmul.f32.gmra.mxu0 %v143
    %v182 = vpop.f32.mrf.mxu0
    %v183 = vadd.f32 %v140, %v182
    %184 = vdwg.mxu0
    %185 = vmatpush.msra.mxu0 0.0
    %186 = vmatpush.msra.mxu0 0.0
    %187 = vmatpush.msra.mxu0 0.0
    %188 = vmatpush.msra.mxu0 0.0
    %189 = vmatpush.msra.mxu0 0.0
    %190 = vmatpush.msra.mxu0 0.0
    %191 = vmatpush.msra.mxu0 0.0
    %192 = vmatpush.msra.mxu0 0.0
    %193 = vmatpush.msra.mxu0 0.0
    %194 = vmatpush.msra.mxu0 0.0
    %195 = vmatpush.msra.mxu0 0.0
    %196 = vmatpush.msra.mxu0 0.0
    %197 = vmatpush.msra.mxu0 0.0
    %198 = vmatpush.msra.mxu0 0.0
    %199 = vmatpush.msra.mxu0 0.0
    %200 = vmatpush.msra.mxu0 %v63
    %201 = vmatmul.f32.gmra.mxu0 %v143
    %v202 = vpop.f32.mrf.mxu0
    %v203 = vadd.f32 %v140, %v202
    %204 = vdwg.mxu0
    %v205 = vld [vmem:[%s1] sm:$0xff]
    %v206 = vld [vmem:[%s1 + $0x8] sm:$0xff]
    %v207 = vld [vmem:[%s1 + $0x10] sm:$0xff]
    %v208 = vld [vmem:[%s1 + $0x18] sm:$0xff]
    %v209 = vld [vmem:[%s2] sm:$0xff]
    %v210 = vld [vmem:[%s2 + $0x8] sm:$0xff]
    %v211 = vld [vmem:[%s2 + $0x10] sm:$0xff]
    %v212 = vld [vmem:[%s2 + $0x18] sm:$0xff]
    %214 = vset.pattern.permute.xlu0 0
    %215 = vperm.xlu0 %214, %v209
    %v216 = vpop.permute.xlu0 %215
    %219 = vset.pattern.permute.xlu0 0
    %220 = vperm.xlu0 %219, %v210
    %v221 = vpop.permute.xlu0 %220
    %224 = vset.pattern.permute.xlu0 0
    %225 = vperm.xlu0 %224, %v211
    %v226 = vpop.permute.xlu0 %225
    %229 = vset.pattern.permute.xlu0 0
    %230 = vperm.xlu0 %229, %v212
    %v231 = vpop.permute.xlu0 %230
    %v234 = vsel %vm71, %v205, 0
    %v237 = vsel %vm71, %v206, 0
    %v240 = vsel %vm71, %v207, 0
    %v243 = vsel %vm71, %v208, 0
    %245 = vmatpush.msra.mxu0 0.0
    %246 = vmatpush.msra.mxu0 0.0
    %247 = vmatpush.msra.mxu0 0.0
    %248 = vmatpush.msra.mxu0 0.0
    %249 = vmatpush.msra.mxu0 0.0
    %250 = vmatpush.msra.mxu0 0.0
    %251 = vmatpush.msra.mxu0 0.0
    %252 = vmatpush.msra.mxu0 0.0
    %253 = vmatpush.msra.mxu0 0.0
    %254 = vmatpush.msra.mxu0 0.0
    %255 = vmatpush.msra.mxu0 0.0
    %256 = vmatpush.msra.mxu0 0.0
    %257 = vmatpush.msra.mxu0 0.0
    %258 = vmatpush.msra.mxu0 0.0
    %259 = vmatpush.msra.mxu0 0.0
    %260 = vmatpush.msra.mxu0 %v55
    %261 = vmatmul.f32.gmra.mxu0 %v234
    %v262 = vpop.f32.mrf.mxu0
    %v263 = vadd.f32 %v216, %v262
    %264 = vmatmul.f32.gmra.mxu0 %v237
    %v265 = vpop.f32.mrf.mxu0
    %v266 = vadd.f32 %v221, %v265
    %267 = vmatmul.f32.gmra.mxu0 %v240
    %v268 = vpop.f32.mrf.mxu0
    %v269 = vadd.f32 %v226, %v268
    %270 = vmatmul.f32.gmra.mxu0 %v243
    %v271 = vpop.f32.mrf.mxu0
    %v272 = vadd.f32 %v231, %v271
    %273 = vdwg.mxu0
    %274 = vmatpush.msra.mxu0 0.0
    %275 = vmatpush.msra.mxu0 0.0
    %276 = vmatpush.msra.mxu0 0.0
    %277 = vmatpush.msra.mxu0 0.0
    %278 = vmatpush.msra.mxu0 0.0
    %279 = vmatpush.msra.mxu0 0.0
    %280 = vmatpush.msra.mxu0 0.0
    %281 = vmatpush.msra.mxu0 0.0
    %282 = vmatpush.msra.mxu0 0.0
    %283 = vmatpush.msra.mxu0 0.0
    %284 = vmatpush.msra.mxu0 0.0
    %285 = vmatpush.msra.mxu0 0.0
    %286 = vmatpush.msra.mxu0 0.0
    %287 = vmatpush.msra.mxu0 0.0
    %288 = vmatpush.msra.mxu0 0.0
    %289 = vmatpush.msra.mxu0 %v56
    %290 = vmatmul.f32.gmra.mxu0 %v234
    %v291 = vpop.f32.mrf.mxu0
    %v292 = vadd.f32 %v216, %v291
    %293 = vmatmul.f32.gmra.mxu0 %v237
    %v294 = vpop.f32.mrf.mxu0
    %v295 = vadd.f32 %v221, %v294
    %296 = vmatmul.f32.gmra.mxu0 %v240
    %v297 = vpop.f32.mrf.mxu0
    %v298 = vadd.f32 %v226, %v297
    %299 = vmatmul.f32.gmra.mxu0 %v243
    %v300 = vpop.f32.mrf.mxu0
    %v301 = vadd.f32 %v231, %v300
    %302 = vdwg.mxu0
    %303 = vmatpush.msra.mxu0 0.0
    %304 = vmatpush.msra.mxu0 0.0
    %305 = vmatpush.msra.mxu0 0.0
    %306 = vmatpush.msra.mxu0 0.0
    %307 = vmatpush.msra.mxu0 0.0
    %308 = vmatpush.msra.mxu0 0.0
    %309 = vmatpush.msra.mxu0 0.0
    %310 = vmatpush.msra.mxu0 0.0
    %311 = vmatpush.msra.mxu0 0.0
    %312 = vmatpush.msra.mxu0 0.0
    %313 = vmatpush.msra.mxu0 0.0
    %314 = vmatpush.msra.mxu0 0.0
    %315 = vmatpush.msra.mxu0 0.0
    %316 = vmatpush.msra.mxu0 0.0
    %317 = vmatpush.msra.mxu0 0.0
    %318 = vmatpush.msra.mxu0 %v57
    %319 = vmatmul.f32.gmra.mxu0 %v234
    %v320 = vpop.f32.mrf.mxu0
    %v321 = vadd.f32 %v216, %v320
    %322 = vmatmul.f32.gmra.mxu0 %v237
    %v323 = vpop.f32.mrf.mxu0
    %v324 = vadd.f32 %v221, %v323
    %325 = vmatmul.f32.gmra.mxu0 %v240
    %v326 = vpop.f32.mrf.mxu0
    %v327 = vadd.f32 %v226, %v326
    %328 = vmatmul.f32.gmra.mxu0 %v243
    %v329 = vpop.f32.mrf.mxu0
    %v330 = vadd.f32 %v231, %v329
    %331 = vdwg.mxu0
    %v332 = vmax.f32 %v263, 0.0
    %v333 = vmax.f32 %v292, 0.0
    %v334 = vmax.f32 %v321, 0.0
    %v335 = vmax.f32 %v266, 0.0
    %v336 = vmax.f32 %v295, 0.0
    %v337 = vmax.f32 %v324, 0.0
    %v338 = vmax.f32 %v269, 0.0
    %v339 = vmax.f32 %v298, 0.0
    %v340 = vmax.f32 %v327, 0.0
    %v341 = vmax.f32 %v272, 0.0
    %v342 = vmax.f32 %v301, 0.0
    %v343 = vmax.f32 %v330, 0.0
    %v344 = vadd.f32 %v332, %v335
    %v345 = vadd.f32 %v344, %v338
    %v346 = vadd.f32 %v345, %v341
    %v347 = vrot.slane %v346, 4
    %v348 = vadd.f32 %v346, %v347
    %v349 = vrot.slane %v348, 2
    %v350 = vadd.f32 %v348, %v349
    %v351 = vrot.slane %v350, 1
    %v352 = vadd.f32 %v350, %v351
    %v353 = vadd.f32 %v333, %v336
    %v354 = vadd.f32 %v353, %v339
    %v355 = vadd.f32 %v354, %v342
    %v356 = vrot.slane %v355, 4
    %v357 = vadd.f32 %v355, %v356
    %v358 = vrot.slane %v357, 2
    %v359 = vadd.f32 %v357, %v358
    %v360 = vrot.slane %v359, 1
    %v361 = vadd.f32 %v359, %v360
    %v362 = vadd.f32 %v334, %v337
    %v363 = vadd.f32 %v362, %v340
    %v364 = vadd.f32 %v363, %v343
    %v365 = vrot.slane %v364, 4
    %v366 = vadd.f32 %v364, %v365
    %v367 = vrot.slane %v366, 2
    %v368 = vadd.f32 %v366, %v367
    %v369 = vrot.slane %v368, 1
    %v370 = vadd.f32 %v368, %v369
    %v371 = vmul.f32 %v352, 0.03125
    %v372 = vmul.f32 %v361, 0.03125
    %v373 = vmul.f32 %v370, 0.03125
    %v374 = vsub.f32 %v332, %v371
    %v375 = vsub.f32 %v333, %v372
    %v376 = vsub.f32 %v334, %v373
    %v377 = vsub.f32 %v335, %v371
    %v378 = vsub.f32 %v336, %v372
    %v379 = vsub.f32 %v337, %v373
    %v380 = vsub.f32 %v338, %v371
    %v381 = vsub.f32 %v339, %v372
    %v382 = vsub.f32 %v340, %v373
    %v383 = vsub.f32 %v341, %v371
    %v384 = vsub.f32 %v342, %v372
    %v385 = vsub.f32 %v343, %v373
    %v386 = vmul.f32 %v374, %v374
    %v387 = vmul.f32 %v375, %v375
    %v388 = vmul.f32 %v376, %v376
    %v389 = vmul.f32 %v377, %v377
    %v390 = vmul.f32 %v378, %v378
    %v391 = vmul.f32 %v379, %v379
    %v392 = vmul.f32 %v380, %v380
    %v393 = vmul.f32 %v381, %v381
    %v394 = vmul.f32 %v382, %v382
    %v395 = vmul.f32 %v383, %v383
    %v396 = vmul.f32 %v384, %v384
    %v397 = vmul.f32 %v385, %v385
    %v398 = vadd.f32 %v386, %v389
    %v399 = vadd.f32 %v398, %v392
    %v400 = vadd.f32 %v399, %v395
    %v401 = vrot.slane %v400, 4
    %v402 = vadd.f32 %v400, %v401
    %v403 = vrot.slane %v402, 2
    %v404 = vadd.f32 %v402, %v403
    %v405 = vrot.slane %v404, 1
    %v406 = vadd.f32 %v404, %v405
    %v407 = vadd.f32 %v387, %v390
    %v408 = vadd.f32 %v407, %v393
    %v409 = vadd.f32 %v408, %v396
    %v410 = vrot.slane %v409, 4
    %v411 = vadd.f32 %v409, %v410
    %v412 = vrot.slane %v411, 2
    %v413 = vadd.f32 %v411, %v412
    %v414 = vrot.slane %v413, 1
    %v415 = vadd.f32 %v413, %v414
    %v416 = vadd.f32 %v388, %v391
    %v417 = vadd.f32 %v416, %v394
    %v418 = vadd.f32 %v417, %v397
    %v419 = vrot.slane %v418, 4
    %v420 = vadd.f32 %v418, %v419
    %v421 = vrot.slane %v420, 2
    %v422 = vadd.f32 %v420, %v421
    %v423 = vrot.slane %v422, 1
    %v424 = vadd.f32 %v422, %v423
    %v425 = vmul.f32 %v406, 0.032258064
    %v426 = vmul.f32 %v415, 0.032258064
    %v427 = vmul.f32 %v424, 0.032258064
    %v428 = vrsqrt.pop %v425
    %v429 = vmul.f32 %v428, %v425
    %v430 = vmul.f32 %v429, %v428
    %v431 = vmul.f32 0.5, %v430
    %v432 = vsub.f32 1.5, %v431
    %v433 = vmul.f32 %v428, %v432
    %v434 = vmul.f32 %v425, %v433
    %vm435 = vcmp.eq.f32.partialorder %v425, inf
    %v436 = vsel %vm435, %v425, %v434
    %vm437 = vcmp.eq.f32.partialorder %v425, 0.0
    %v438 = vand.u32 %v425, 2147483648
    %v439 = vsel %vm437, %v438, %v436
    %v440 = vrsqrt.pop %v426
    %v441 = vmul.f32 %v440, %v426
    %v442 = vmul.f32 %v441, %v440
    %v443 = vmul.f32 0.5, %v442
    %v444 = vsub.f32 1.5, %v443
    %v445 = vmul.f32 %v440, %v444
    %v446 = vmul.f32 %v426, %v445
    %vm447 = vcmp.eq.f32.partialorder %v426, inf
    %v448 = vsel %vm447, %v426, %v446
    %vm449 = vcmp.eq.f32.partialorder %v426, 0.0
    %v450 = vand.u32 %v426, 2147483648
    %v451 = vsel %vm449, %v450, %v448
    %v452 = vrsqrt.pop %v427
    %v453 = vmul.f32 %v452, %v427
    %v454 = vmul.f32 %v453, %v452
    %v455 = vmul.f32 0.5, %v454
    %v456 = vsub.f32 1.5, %v455
    %v457 = vmul.f32 %v452, %v456
    %v458 = vmul.f32 %v427, %v457
    %vm459 = vcmp.eq.f32.partialorder %v427, inf
    %v460 = vsel %vm459, %v427, %v458
    %vm461 = vcmp.eq.f32.partialorder %v427, 0.0
    %v462 = vand.u32 %v427, 2147483648
    %v463 = vsel %vm461, %v462, %v460
    %v464 = vadd.f32 %v439, 1e-06
    %v465 = vadd.f32 %v451, 1e-06
    %v466 = vadd.f32 %v463, 1e-06
    %v467 = vrcp.pop %v464
    %v468 = vmul.f32 %v464, %v467
    %v469 = vsub.f32 1.0, %v468
    %v470 = vmul.f32 %v467, %v469
    %v471 = vadd.f32 %v467, %v470
    %vm472 = vweird.f32 %v464
    %vm473 = vweird.f32 %v467
    %vm474 = vmor %vm472, %vm473
    %v475 = vsel %vm474, %v467, %v471
    %v476 = vand.u32 2147483647, %v464
    %vm477 = vcmp.eq.f32.partialorder %v476, 8.507059e+37
    %v478 = vand.u32 %v464, 2147483648
    %v479 = vor.u32 1.1754944e-38, %v478
    %v480 = vsel %vm477, %v479, %v475
    %v481 = vmul.f32 1.0, %v480
    %v482 = vrcp.pop %v465
    %v483 = vmul.f32 %v465, %v482
    %v484 = vsub.f32 1.0, %v483
    %v485 = vmul.f32 %v482, %v484
    %v486 = vadd.f32 %v482, %v485
    %vm487 = vweird.f32 %v465
    %vm488 = vweird.f32 %v482
    %vm489 = vmor %vm487, %vm488
    %v490 = vsel %vm489, %v482, %v486
    %v491 = vand.u32 2147483647, %v465
    %vm492 = vcmp.eq.f32.partialorder %v491, 8.507059e+37
    %v493 = vand.u32 %v465, 2147483648
    %v494 = vor.u32 1.1754944e-38, %v493
    %v495 = vsel %vm492, %v494, %v490
    %v496 = vmul.f32 1.0, %v495
    %v497 = vrcp.pop %v466
    %v498 = vmul.f32 %v466, %v497
    %v499 = vsub.f32 1.0, %v498
    %v500 = vmul.f32 %v497, %v499
    %v501 = vadd.f32 %v497, %v500
    %vm502 = vweird.f32 %v466
    %vm503 = vweird.f32 %v497
    %vm504 = vmor %vm502, %vm503
    %v505 = vsel %vm504, %v497, %v501
    %v506 = vand.u32 2147483647, %v466
    %vm507 = vcmp.eq.f32.partialorder %v506, 8.507059e+37
    %v508 = vand.u32 %v466, 2147483648
    %v509 = vor.u32 1.1754944e-38, %v508
    %v510 = vsel %vm507, %v509, %v505
    %v511 = vmul.f32 1.0, %v510
    %v512 = vmul.f32 %v93, %v481
    %v513 = vmul.f32 %v113, %v496
    %v514 = vmul.f32 %v133, %v511
    %v515 = vperm.slane %v512, 0
    %v516 = vperm.slane %v513, 0
    %v517 = vperm.slane %v514, 0
    %v518 = vmul.f32 %v374, %v515
    %v519 = vmul.f32 %v375, %v516
    %v520 = vmul.f32 %v376, %v517
    %v521 = vmul.f32 %v377, %v515
    %v522 = vmul.f32 %v378, %v516
    %v523 = vmul.f32 %v379, %v517
    %v524 = vmul.f32 %v380, %v515
    %v525 = vmul.f32 %v381, %v516
    %v526 = vmul.f32 %v382, %v517
    %v527 = vmul.f32 %v383, %v515
    %v528 = vmul.f32 %v384, %v516
    %v529 = vmul.f32 %v385, %v517
    %v530 = vperm.slane %v93, 1
    %v531 = vperm.slane %v113, 1
    %v532 = vperm.slane %v133, 1
    %v533 = vadd.f32 %v518, %v530
    %v534 = vadd.f32 %v519, %v531
    %v535 = vadd.f32 %v520, %v532
    %v536 = vadd.f32 %v521, %v530
    %v537 = vadd.f32 %v522, %v531
    %v538 = vadd.f32 %v523, %v532
    %v539 = vadd.f32 %v524, %v530
    %v540 = vadd.f32 %v525, %v531
    %v541 = vadd.f32 %v526, %v532
    %v542 = vadd.f32 %v527, %v530
    %v543 = vadd.f32 %v528, %v531
    %v544 = vadd.f32 %v529, %v532
    %v545 = vld [vmem:[%s7] sm:$0xff]
    %v546 = vld [vmem:[%s7 + $0x8] sm:$0xff]
    %v547 = vld [vmem:[%s7 + $0x10] sm:$0xff]
    %v548 = vld [vmem:[%s7 + $0x18] sm:$0xff]
    %v549 = vld [vmem:[%s8] sm:$0xff]
    %v550 = vld [vmem:[%s8 + $0x8] sm:$0xff]
    %v551 = vld [vmem:[%s8 + $0x10] sm:$0xff]
    %v552 = vld [vmem:[%s8 + $0x18] sm:$0xff]
    %554 = vset.pattern.permute.xlu0 0
    %555 = vperm.xlu0 %554, %v549
    %v556 = vpop.permute.xlu0 %555
    %559 = vset.pattern.permute.xlu0 0
    %560 = vperm.xlu0 %559, %v550
    %v561 = vpop.permute.xlu0 %560
    %564 = vset.pattern.permute.xlu0 0
    %565 = vperm.xlu0 %564, %v551
    %v566 = vpop.permute.xlu0 %565
    %569 = vset.pattern.permute.xlu0 0
    %570 = vperm.xlu0 %569, %v552
    %v571 = vpop.permute.xlu0 %570
    %vm573 = vcmask 261120
    %v575 = vsel %vm573, %v545, 0
    %v578 = vsel %vm573, %v546, 0
    %v581 = vsel %vm573, %v547, 0
    %v584 = vsel %vm573, %v548, 0
    %586 = vmatpush.msra.mxu0 0.0
    %587 = vmatpush.msra.mxu0 0.0
    %588 = vmatpush.msra.mxu0 0.0
    %589 = vmatpush.msra.mxu0 0.0
    %590 = vmatpush.msra.mxu0 0.0
    %591 = vmatpush.msra.mxu0 0.0
    %592 = vmatpush.msra.mxu0 0.0
    %593 = vmatpush.msra.mxu0 0.0
    %594 = vmatpush.msra.mxu0 0.0
    %595 = vmatpush.msra.mxu0 0.0
    %596 = vmatpush.msra.mxu0 0.0
    %597 = vmatpush.msra.mxu0 0.0
    %598 = vmatpush.msra.mxu0 %v542
    %599 = vmatpush.msra.mxu0 %v539
    %600 = vmatpush.msra.mxu0 %v536
    %601 = vmatpush.msra.mxu0 %v533
    %602 = vmatmul.f32.gmra.mxu0 %v575
    %v603 = vpop.f32.mrf.mxu0
    %v604 = vadd.f32 %v556, %v603
    %605 = vmatmul.f32.gmra.mxu0 %v578
    %v606 = vpop.f32.mrf.mxu0
    %v607 = vadd.f32 %v561, %v606
    %608 = vmatmul.f32.gmra.mxu0 %v581
    %v609 = vpop.f32.mrf.mxu0
    %v610 = vadd.f32 %v566, %v609
    %611 = vmatmul.f32.gmra.mxu0 %v584
    %v612 = vpop.f32.mrf.mxu0
    %v613 = vadd.f32 %v571, %v612
    %614 = vdwg.mxu0
    %615 = vmatpush.msra.mxu0 0.0
    %616 = vmatpush.msra.mxu0 0.0
    %617 = vmatpush.msra.mxu0 0.0
    %618 = vmatpush.msra.mxu0 0.0
    %619 = vmatpush.msra.mxu0 0.0
    %620 = vmatpush.msra.mxu0 0.0
    %621 = vmatpush.msra.mxu0 0.0
    %622 = vmatpush.msra.mxu0 0.0
    %623 = vmatpush.msra.mxu0 0.0
    %624 = vmatpush.msra.mxu0 0.0
    %625 = vmatpush.msra.mxu0 0.0
    %626 = vmatpush.msra.mxu0 0.0
    %627 = vmatpush.msra.mxu0 %v543
    %628 = vmatpush.msra.mxu0 %v540
    %629 = vmatpush.msra.mxu0 %v537
    %630 = vmatpush.msra.mxu0 %v534
    %631 = vmatmul.f32.gmra.mxu0 %v575
    %v632 = vpop.f32.mrf.mxu0
    %v633 = vadd.f32 %v556, %v632
    %634 = vmatmul.f32.gmra.mxu0 %v578
    %v635 = vpop.f32.mrf.mxu0
    %v636 = vadd.f32 %v561, %v635
    %637 = vmatmul.f32.gmra.mxu0 %v581
    %v638 = vpop.f32.mrf.mxu0
    %v639 = vadd.f32 %v566, %v638
    %640 = vmatmul.f32.gmra.mxu0 %v584
    %v641 = vpop.f32.mrf.mxu0
    %v642 = vadd.f32 %v571, %v641
    %643 = vdwg.mxu0
    %644 = vmatpush.msra.mxu0 0.0
    %645 = vmatpush.msra.mxu0 0.0
    %646 = vmatpush.msra.mxu0 0.0
    %647 = vmatpush.msra.mxu0 0.0
    %648 = vmatpush.msra.mxu0 0.0
    %649 = vmatpush.msra.mxu0 0.0
    %650 = vmatpush.msra.mxu0 0.0
    %651 = vmatpush.msra.mxu0 0.0
    %652 = vmatpush.msra.mxu0 0.0
    %653 = vmatpush.msra.mxu0 0.0
    %654 = vmatpush.msra.mxu0 0.0
    %655 = vmatpush.msra.mxu0 0.0
    %656 = vmatpush.msra.mxu0 %v544
    %657 = vmatpush.msra.mxu0 %v541
    %658 = vmatpush.msra.mxu0 %v538
    %659 = vmatpush.msra.mxu0 %v535
    %660 = vmatmul.f32.gmra.mxu0 %v575
    %v661 = vpop.f32.mrf.mxu0
    %v662 = vadd.f32 %v556, %v661
    %663 = vmatmul.f32.gmra.mxu0 %v578
    %v664 = vpop.f32.mrf.mxu0
    %v665 = vadd.f32 %v561, %v664
    %666 = vmatmul.f32.gmra.mxu0 %v581
    %v667 = vpop.f32.mrf.mxu0
    %v668 = vadd.f32 %v566, %v667
    %669 = vmatmul.f32.gmra.mxu0 %v584
    %v670 = vpop.f32.mrf.mxu0
    %v671 = vadd.f32 %v571, %v670
    %672 = vdwg.mxu0
    %v673 = vmax.f32 %v604, 0.0
    %v674 = vmax.f32 %v633, 0.0
    %v675 = vmax.f32 %v662, 0.0
    %v676 = vmax.f32 %v607, 0.0
    %v677 = vmax.f32 %v636, 0.0
    %v678 = vmax.f32 %v665, 0.0
    %v679 = vmax.f32 %v610, 0.0
    %v680 = vmax.f32 %v639, 0.0
    %v681 = vmax.f32 %v668, 0.0
    %v682 = vmax.f32 %v613, 0.0
    %v683 = vmax.f32 %v642, 0.0
    %v684 = vmax.f32 %v671, 0.0
    %v685 = vadd.f32 %v673, %v676
    %v686 = vadd.f32 %v685, %v679
    %v687 = vadd.f32 %v686, %v682
    %v688 = vrot.slane %v687, 4
    %v689 = vadd.f32 %v687, %v688
    %v690 = vrot.slane %v689, 2
    %v691 = vadd.f32 %v689, %v690
    %v692 = vrot.slane %v691, 1
    %v693 = vadd.f32 %v691, %v692
    %v694 = vadd.f32 %v674, %v677
    %v695 = vadd.f32 %v694, %v680
    %v696 = vadd.f32 %v695, %v683
    %v697 = vrot.slane %v696, 4
    %v698 = vadd.f32 %v696, %v697
    %v699 = vrot.slane %v698, 2
    %v700 = vadd.f32 %v698, %v699
    %v701 = vrot.slane %v700, 1
    %v702 = vadd.f32 %v700, %v701
    %v703 = vadd.f32 %v675, %v678
    %v704 = vadd.f32 %v703, %v681
    %v705 = vadd.f32 %v704, %v684
    %v706 = vrot.slane %v705, 4
    %v707 = vadd.f32 %v705, %v706
    %v708 = vrot.slane %v707, 2
    %v709 = vadd.f32 %v707, %v708
    %v710 = vrot.slane %v709, 1
    %v711 = vadd.f32 %v709, %v710
    %v712 = vmul.f32 %v693, 0.03125
    %v713 = vmul.f32 %v702, 0.03125
    %v714 = vmul.f32 %v711, 0.03125
    %v715 = vsub.f32 %v673, %v712
    %v716 = vsub.f32 %v674, %v713
    %v717 = vsub.f32 %v675, %v714
    %v718 = vsub.f32 %v676, %v712
    %v719 = vsub.f32 %v677, %v713
    %v720 = vsub.f32 %v678, %v714
    %v721 = vsub.f32 %v679, %v712
    %v722 = vsub.f32 %v680, %v713
    %v723 = vsub.f32 %v681, %v714
    %v724 = vsub.f32 %v682, %v712
    %v725 = vsub.f32 %v683, %v713
    %v726 = vsub.f32 %v684, %v714
    %v727 = vmul.f32 %v715, %v715
    %v728 = vmul.f32 %v716, %v716
    %v729 = vmul.f32 %v717, %v717
    %v730 = vmul.f32 %v718, %v718
    %v731 = vmul.f32 %v719, %v719
    %v732 = vmul.f32 %v720, %v720
    %v733 = vmul.f32 %v721, %v721
    %v734 = vmul.f32 %v722, %v722
    %v735 = vmul.f32 %v723, %v723
    %v736 = vmul.f32 %v724, %v724
    %v737 = vmul.f32 %v725, %v725
    %v738 = vmul.f32 %v726, %v726
    %v739 = vadd.f32 %v727, %v730
    %v740 = vadd.f32 %v739, %v733
    %v741 = vadd.f32 %v740, %v736
    %v742 = vrot.slane %v741, 4
    %v743 = vadd.f32 %v741, %v742
    %v744 = vrot.slane %v743, 2
    %v745 = vadd.f32 %v743, %v744
    %v746 = vrot.slane %v745, 1
    %v747 = vadd.f32 %v745, %v746
    %v748 = vadd.f32 %v728, %v731
    %v749 = vadd.f32 %v748, %v734
    %v750 = vadd.f32 %v749, %v737
    %v751 = vrot.slane %v750, 4
    %v752 = vadd.f32 %v750, %v751
    %v753 = vrot.slane %v752, 2
    %v754 = vadd.f32 %v752, %v753
    %v755 = vrot.slane %v754, 1
    %v756 = vadd.f32 %v754, %v755
    %v757 = vadd.f32 %v729, %v732
    %v758 = vadd.f32 %v757, %v735
    %v759 = vadd.f32 %v758, %v738
    %v760 = vrot.slane %v759, 4
    %v761 = vadd.f32 %v759, %v760
    %v762 = vrot.slane %v761, 2
    %v763 = vadd.f32 %v761, %v762
    %v764 = vrot.slane %v763, 1
    %v765 = vadd.f32 %v763, %v764
    %v766 = vmul.f32 %v747, 0.032258064
    %v767 = vmul.f32 %v756, 0.032258064
    %v768 = vmul.f32 %v765, 0.032258064
    %v769 = vrsqrt.pop %v766
    %v770 = vmul.f32 %v769, %v766
    %v771 = vmul.f32 %v770, %v769
    %v772 = vmul.f32 0.5, %v771
    %v773 = vsub.f32 1.5, %v772
    %v774 = vmul.f32 %v769, %v773
    %v775 = vmul.f32 %v766, %v774
    %vm776 = vcmp.eq.f32.partialorder %v766, inf
    %v777 = vsel %vm776, %v766, %v775
    %vm778 = vcmp.eq.f32.partialorder %v766, 0.0
    %v779 = vand.u32 %v766, 2147483648
    %v780 = vsel %vm778, %v779, %v777
    %v781 = vrsqrt.pop %v767
    %v782 = vmul.f32 %v781, %v767
    %v783 = vmul.f32 %v782, %v781
    %v784 = vmul.f32 0.5, %v783
    %v785 = vsub.f32 1.5, %v784
    %v786 = vmul.f32 %v781, %v785
    %v787 = vmul.f32 %v767, %v786
    %vm788 = vcmp.eq.f32.partialorder %v767, inf
    %v789 = vsel %vm788, %v767, %v787
    %vm790 = vcmp.eq.f32.partialorder %v767, 0.0
    %v791 = vand.u32 %v767, 2147483648
    %v792 = vsel %vm790, %v791, %v789
    %v793 = vrsqrt.pop %v768
    %v794 = vmul.f32 %v793, %v768
    %v795 = vmul.f32 %v794, %v793
    %v796 = vmul.f32 0.5, %v795
    %v797 = vsub.f32 1.5, %v796
    %v798 = vmul.f32 %v793, %v797
    %v799 = vmul.f32 %v768, %v798
    %vm800 = vcmp.eq.f32.partialorder %v768, inf
    %v801 = vsel %vm800, %v768, %v799
    %vm802 = vcmp.eq.f32.partialorder %v768, 0.0
    %v803 = vand.u32 %v768, 2147483648
    %v804 = vsel %vm802, %v803, %v801
    %v805 = vadd.f32 %v780, 1e-06
    %v806 = vadd.f32 %v792, 1e-06
    %v807 = vadd.f32 %v804, 1e-06
    %v808 = vrcp.pop %v805
    %v809 = vmul.f32 %v805, %v808
    %v810 = vsub.f32 1.0, %v809
    %v811 = vmul.f32 %v808, %v810
    %v812 = vadd.f32 %v808, %v811
    %vm813 = vweird.f32 %v805
    %vm814 = vweird.f32 %v808
    %vm815 = vmor %vm813, %vm814
    %v816 = vsel %vm815, %v808, %v812
    %v817 = vand.u32 2147483647, %v805
    %vm818 = vcmp.eq.f32.partialorder %v817, 8.507059e+37
    %v819 = vand.u32 %v805, 2147483648
    %v820 = vor.u32 1.1754944e-38, %v819
    %v821 = vsel %vm818, %v820, %v816
    %v822 = vmul.f32 1.0, %v821
    %v823 = vrcp.pop %v806
    %v824 = vmul.f32 %v806, %v823
    %v825 = vsub.f32 1.0, %v824
    %v826 = vmul.f32 %v823, %v825
    %v827 = vadd.f32 %v823, %v826
    %vm828 = vweird.f32 %v806
    %vm829 = vweird.f32 %v823
    %vm830 = vmor %vm828, %vm829
    %v831 = vsel %vm830, %v823, %v827
    %v832 = vand.u32 2147483647, %v806
    %vm833 = vcmp.eq.f32.partialorder %v832, 8.507059e+37
    %v834 = vand.u32 %v806, 2147483648
    %v835 = vor.u32 1.1754944e-38, %v834
    %v836 = vsel %vm833, %v835, %v831
    %v837 = vmul.f32 1.0, %v836
    %v838 = vrcp.pop %v807
    %v839 = vmul.f32 %v807, %v838
    %v840 = vsub.f32 1.0, %v839
    %v841 = vmul.f32 %v838, %v840
    %v842 = vadd.f32 %v838, %v841
    %vm843 = vweird.f32 %v807
    %vm844 = vweird.f32 %v838
    %vm845 = vmor %vm843, %vm844
    %v846 = vsel %vm845, %v838, %v842
    %v847 = vand.u32 2147483647, %v807
    %vm848 = vcmp.eq.f32.partialorder %v847, 8.507059e+37
    %v849 = vand.u32 %v807, 2147483648
    %v850 = vor.u32 1.1754944e-38, %v849
    %v851 = vsel %vm848, %v850, %v846
    %v852 = vmul.f32 1.0, %v851
    %v853 = vmul.f32 %v93, %v822
    %v854 = vmul.f32 %v113, %v837
    %v855 = vmul.f32 %v133, %v852
    %v856 = vperm.slane %v853, 2
    %v857 = vperm.slane %v854, 2
    %v858 = vperm.slane %v855, 2
    %v859 = vmul.f32 %v715, %v856
    %v860 = vmul.f32 %v716, %v857
    %v861 = vmul.f32 %v717, %v858
    %v862 = vmul.f32 %v718, %v856
    %v863 = vmul.f32 %v719, %v857
    %v864 = vmul.f32 %v720, %v858
    %v865 = vmul.f32 %v721, %v856
    %v866 = vmul.f32 %v722, %v857
    %v867 = vmul.f32 %v723, %v858
    %v868 = vmul.f32 %v724, %v856
    %v869 = vmul.f32 %v725, %v857
    %v870 = vmul.f32 %v726, %v858
    %v871 = vperm.slane %v93, 3
    %v872 = vperm.slane %v113, 3
    %v873 = vperm.slane %v133, 3
    %v874 = vadd.f32 %v859, %v871
    %v875 = vadd.f32 %v860, %v872
    %v876 = vadd.f32 %v861, %v873
    %v877 = vadd.f32 %v862, %v871
    %v878 = vadd.f32 %v863, %v872
    %v879 = vadd.f32 %v864, %v873
    %v880 = vadd.f32 %v865, %v871
    %v881 = vadd.f32 %v866, %v872
    %v882 = vadd.f32 %v867, %v873
    %v883 = vadd.f32 %v868, %v871
    %v884 = vadd.f32 %v869, %v872
    %v885 = vadd.f32 %v870, %v873
    %s886 = scalar_lea.vmem %s7, 32
    %v887 = vld [vmem:[%s886] sm:$0xff]
    %v888 = vld [vmem:[%s886 + $0x8] sm:$0xff]
    %v889 = vld [vmem:[%s886 + $0x10] sm:$0xff]
    %v890 = vld [vmem:[%s886 + $0x18] sm:$0xff]
    %s891 = scalar_lea.vmem %s8, 32
    %v892 = vld [vmem:[%s891] sm:$0xff]
    %v893 = vld [vmem:[%s891 + $0x8] sm:$0xff]
    %v894 = vld [vmem:[%s891 + $0x10] sm:$0xff]
    %v895 = vld [vmem:[%s891 + $0x18] sm:$0xff]
    %897 = vset.pattern.permute.xlu0 0
    %898 = vperm.xlu0 %897, %v892
    %v899 = vpop.permute.xlu0 %898
    %902 = vset.pattern.permute.xlu0 0
    %903 = vperm.xlu0 %902, %v893
    %v904 = vpop.permute.xlu0 %903
    %907 = vset.pattern.permute.xlu0 0
    %908 = vperm.xlu0 %907, %v894
    %v909 = vpop.permute.xlu0 %908
    %912 = vset.pattern.permute.xlu0 0
    %913 = vperm.xlu0 %912, %v895
    %v914 = vpop.permute.xlu0 %913
    %v917 = vsel %vm573, %v887, 0
    %v920 = vsel %vm573, %v888, 0
    %v923 = vsel %vm573, %v889, 0
    %v926 = vsel %vm573, %v890, 0
    %928 = vmatpush.msra.mxu0 0.0
    %929 = vmatpush.msra.mxu0 0.0
    %930 = vmatpush.msra.mxu0 0.0
    %931 = vmatpush.msra.mxu0 0.0
    %932 = vmatpush.msra.mxu0 0.0
    %933 = vmatpush.msra.mxu0 0.0
    %934 = vmatpush.msra.mxu0 0.0
    %935 = vmatpush.msra.mxu0 0.0
    %936 = vmatpush.msra.mxu0 0.0
    %937 = vmatpush.msra.mxu0 0.0
    %938 = vmatpush.msra.mxu0 0.0
    %939 = vmatpush.msra.mxu0 0.0
    %940 = vmatpush.msra.mxu0 %v883
    %941 = vmatpush.msra.mxu0 %v880
    %942 = vmatpush.msra.mxu0 %v877
    %943 = vmatpush.msra.mxu0 %v874
    %944 = vmatmul.f32.gmra.mxu0 %v917
    %v945 = vpop.f32.mrf.mxu0
    %v946 = vadd.f32 %v899, %v945
    %947 = vmatmul.f32.gmra.mxu0 %v920
    %v948 = vpop.f32.mrf.mxu0
    %v949 = vadd.f32 %v904, %v948
    %950 = vmatmul.f32.gmra.mxu0 %v923
    %v951 = vpop.f32.mrf.mxu0
    %v952 = vadd.f32 %v909, %v951
    %953 = vmatmul.f32.gmra.mxu0 %v926
    %v954 = vpop.f32.mrf.mxu0
    %v955 = vadd.f32 %v914, %v954
    %956 = vdwg.mxu0
    %957 = vmatpush.msra.mxu0 0.0
    %958 = vmatpush.msra.mxu0 0.0
    %959 = vmatpush.msra.mxu0 0.0
    %960 = vmatpush.msra.mxu0 0.0
    %961 = vmatpush.msra.mxu0 0.0
    %962 = vmatpush.msra.mxu0 0.0
    %963 = vmatpush.msra.mxu0 0.0
    %964 = vmatpush.msra.mxu0 0.0
    %965 = vmatpush.msra.mxu0 0.0
    %966 = vmatpush.msra.mxu0 0.0
    %967 = vmatpush.msra.mxu0 0.0
    %968 = vmatpush.msra.mxu0 0.0
    %969 = vmatpush.msra.mxu0 %v884
    %970 = vmatpush.msra.mxu0 %v881
    %971 = vmatpush.msra.mxu0 %v878
    %972 = vmatpush.msra.mxu0 %v875
    %973 = vmatmul.f32.gmra.mxu0 %v917
    %v974 = vpop.f32.mrf.mxu0
    %v975 = vadd.f32 %v899, %v974
    %976 = vmatmul.f32.gmra.mxu0 %v920
    %v977 = vpop.f32.mrf.mxu0
    %v978 = vadd.f32 %v904, %v977
    %979 = vmatmul.f32.gmra.mxu0 %v923
    %v980 = vpop.f32.mrf.mxu0
    %v981 = vadd.f32 %v909, %v980
    %982 = vmatmul.f32.gmra.mxu0 %v926
    %v983 = vpop.f32.mrf.mxu0
    %v984 = vadd.f32 %v914, %v983
    %985 = vdwg.mxu0
    %986 = vmatpush.msra.mxu0 0.0
    %987 = vmatpush.msra.mxu0 0.0
    %988 = vmatpush.msra.mxu0 0.0
    %989 = vmatpush.msra.mxu0 0.0
    %990 = vmatpush.msra.mxu0 0.0
    %991 = vmatpush.msra.mxu0 0.0
    %992 = vmatpush.msra.mxu0 0.0
    %993 = vmatpush.msra.mxu0 0.0
    %994 = vmatpush.msra.mxu0 0.0
    %995 = vmatpush.msra.mxu0 0.0
    %996 = vmatpush.msra.mxu0 0.0
    %997 = vmatpush.msra.mxu0 0.0
    %998 = vmatpush.msra.mxu0 %v885
    %999 = vmatpush.msra.mxu0 %v882
    %1000 = vmatpush.msra.mxu0 %v879
    %1001 = vmatpush.msra.mxu0 %v876
    %1002 = vmatmul.f32.gmra.mxu0 %v917
    %v1003 = vpop.f32.mrf.mxu0
    %v1004 = vadd.f32 %v899, %v1003
    %1005 = vmatmul.f32.gmra.mxu0 %v920
    %v1006 = vpop.f32.mrf.mxu0
    %v1007 = vadd.f32 %v904, %v1006
    %1008 = vmatmul.f32.gmra.mxu0 %v923
    %v1009 = vpop.f32.mrf.mxu0
    %v1010 = vadd.f32 %v909, %v1009
    %1011 = vmatmul.f32.gmra.mxu0 %v926
    %v1012 = vpop.f32.mrf.mxu0
    %v1013 = vadd.f32 %v914, %v1012
    %1014 = vdwg.mxu0
    %v1015 = vmax.f32 %v946, 0.0
    %v1016 = vmax.f32 %v975, 0.0
    %v1017 = vmax.f32 %v1004, 0.0
    %v1018 = vmax.f32 %v949, 0.0
    %v1019 = vmax.f32 %v978, 0.0
    %v1020 = vmax.f32 %v1007, 0.0
    %v1021 = vmax.f32 %v952, 0.0
    %v1022 = vmax.f32 %v981, 0.0
    %v1023 = vmax.f32 %v1010, 0.0
    %v1024 = vmax.f32 %v955, 0.0
    %v1025 = vmax.f32 %v984, 0.0
    %v1026 = vmax.f32 %v1013, 0.0
    %v1027 = vadd.f32 %v1015, %v1018
    %v1028 = vadd.f32 %v1027, %v1021
    %v1029 = vadd.f32 %v1028, %v1024
    %v1030 = vrot.slane %v1029, 4
    %v1031 = vadd.f32 %v1029, %v1030
    %v1032 = vrot.slane %v1031, 2
    %v1033 = vadd.f32 %v1031, %v1032
    %v1034 = vrot.slane %v1033, 1
    %v1035 = vadd.f32 %v1033, %v1034
    %v1036 = vadd.f32 %v1016, %v1019
    %v1037 = vadd.f32 %v1036, %v1022
    %v1038 = vadd.f32 %v1037, %v1025
    %v1039 = vrot.slane %v1038, 4
    %v1040 = vadd.f32 %v1038, %v1039
    %v1041 = vrot.slane %v1040, 2
    %v1042 = vadd.f32 %v1040, %v1041
    %v1043 = vrot.slane %v1042, 1
    %v1044 = vadd.f32 %v1042, %v1043
    %v1045 = vadd.f32 %v1017, %v1020
    %v1046 = vadd.f32 %v1045, %v1023
    %v1047 = vadd.f32 %v1046, %v1026
    %v1048 = vrot.slane %v1047, 4
    %v1049 = vadd.f32 %v1047, %v1048
    %v1050 = vrot.slane %v1049, 2
    %v1051 = vadd.f32 %v1049, %v1050
    %v1052 = vrot.slane %v1051, 1
    %v1053 = vadd.f32 %v1051, %v1052
    %v1054 = vmul.f32 %v1035, 0.03125
    %v1055 = vmul.f32 %v1044, 0.03125
    %v1056 = vmul.f32 %v1053, 0.03125
    %v1057 = vsub.f32 %v1015, %v1054
    %v1058 = vsub.f32 %v1016, %v1055
    %v1059 = vsub.f32 %v1017, %v1056
    %v1060 = vsub.f32 %v1018, %v1054
    %v1061 = vsub.f32 %v1019, %v1055
    %v1062 = vsub.f32 %v1020, %v1056
    %v1063 = vsub.f32 %v1021, %v1054
    %v1064 = vsub.f32 %v1022, %v1055
    %v1065 = vsub.f32 %v1023, %v1056
    %v1066 = vsub.f32 %v1024, %v1054
    %v1067 = vsub.f32 %v1025, %v1055
    %v1068 = vsub.f32 %v1026, %v1056
    %v1069 = vmul.f32 %v1057, %v1057
    %v1070 = vmul.f32 %v1058, %v1058
    %v1071 = vmul.f32 %v1059, %v1059
    %v1072 = vmul.f32 %v1060, %v1060
    %v1073 = vmul.f32 %v1061, %v1061
    %v1074 = vmul.f32 %v1062, %v1062
    %v1075 = vmul.f32 %v1063, %v1063
    %v1076 = vmul.f32 %v1064, %v1064
    %v1077 = vmul.f32 %v1065, %v1065
    %v1078 = vmul.f32 %v1066, %v1066
    %v1079 = vmul.f32 %v1067, %v1067
    %v1080 = vmul.f32 %v1068, %v1068
    %v1081 = vadd.f32 %v1069, %v1072
    %v1082 = vadd.f32 %v1081, %v1075
    %v1083 = vadd.f32 %v1082, %v1078
    %v1084 = vrot.slane %v1083, 4
    %v1085 = vadd.f32 %v1083, %v1084
    %v1086 = vrot.slane %v1085, 2
    %v1087 = vadd.f32 %v1085, %v1086
    %v1088 = vrot.slane %v1087, 1
    %v1089 = vadd.f32 %v1087, %v1088
    %v1090 = vadd.f32 %v1070, %v1073
    %v1091 = vadd.f32 %v1090, %v1076
    %v1092 = vadd.f32 %v1091, %v1079
    %v1093 = vrot.slane %v1092, 4
    %v1094 = vadd.f32 %v1092, %v1093
    %v1095 = vrot.slane %v1094, 2
    %v1096 = vadd.f32 %v1094, %v1095
    %v1097 = vrot.slane %v1096, 1
    %v1098 = vadd.f32 %v1096, %v1097
    %v1099 = vadd.f32 %v1071, %v1074
    %v1100 = vadd.f32 %v1099, %v1077
    %v1101 = vadd.f32 %v1100, %v1080
    %v1102 = vrot.slane %v1101, 4
    %v1103 = vadd.f32 %v1101, %v1102
    %v1104 = vrot.slane %v1103, 2
    %v1105 = vadd.f32 %v1103, %v1104
    %v1106 = vrot.slane %v1105, 1
    %v1107 = vadd.f32 %v1105, %v1106
    %v1108 = vmul.f32 %v1089, 0.032258064
    %v1109 = vmul.f32 %v1098, 0.032258064
    %v1110 = vmul.f32 %v1107, 0.032258064
    %v1111 = vrsqrt.pop %v1108
    %v1112 = vmul.f32 %v1111, %v1108
    %v1113 = vmul.f32 %v1112, %v1111
    %v1114 = vmul.f32 0.5, %v1113
    %v1115 = vsub.f32 1.5, %v1114
    %v1116 = vmul.f32 %v1111, %v1115
    %v1117 = vmul.f32 %v1108, %v1116
    %vm1118 = vcmp.eq.f32.partialorder %v1108, inf
    %v1119 = vsel %vm1118, %v1108, %v1117
    %vm1120 = vcmp.eq.f32.partialorder %v1108, 0.0
    %v1121 = vand.u32 %v1108, 2147483648
    %v1122 = vsel %vm1120, %v1121, %v1119
    %v1123 = vrsqrt.pop %v1109
    %v1124 = vmul.f32 %v1123, %v1109
    %v1125 = vmul.f32 %v1124, %v1123
    %v1126 = vmul.f32 0.5, %v1125
    %v1127 = vsub.f32 1.5, %v1126
    %v1128 = vmul.f32 %v1123, %v1127
    %v1129 = vmul.f32 %v1109, %v1128
    %vm1130 = vcmp.eq.f32.partialorder %v1109, inf
    %v1131 = vsel %vm1130, %v1109, %v1129
    %vm1132 = vcmp.eq.f32.partialorder %v1109, 0.0
    %v1133 = vand.u32 %v1109, 2147483648
    %v1134 = vsel %vm1132, %v1133, %v1131
    %v1135 = vrsqrt.pop %v1110
    %v1136 = vmul.f32 %v1135, %v1110
    %v1137 = vmul.f32 %v1136, %v1135
    %v1138 = vmul.f32 0.5, %v1137
    %v1139 = vsub.f32 1.5, %v1138
    %v1140 = vmul.f32 %v1135, %v1139
    %v1141 = vmul.f32 %v1110, %v1140
    %vm1142 = vcmp.eq.f32.partialorder %v1110, inf
    %v1143 = vsel %vm1142, %v1110, %v1141
    %vm1144 = vcmp.eq.f32.partialorder %v1110, 0.0
    %v1145 = vand.u32 %v1110, 2147483648
    %v1146 = vsel %vm1144, %v1145, %v1143
    %v1147 = vadd.f32 %v1122, 1e-06
    %v1148 = vadd.f32 %v1134, 1e-06
    %v1149 = vadd.f32 %v1146, 1e-06
    %v1150 = vrcp.pop %v1147
    %v1151 = vmul.f32 %v1147, %v1150
    %v1152 = vsub.f32 1.0, %v1151
    %v1153 = vmul.f32 %v1150, %v1152
    %v1154 = vadd.f32 %v1150, %v1153
    %vm1155 = vweird.f32 %v1147
    %vm1156 = vweird.f32 %v1150
    %vm1157 = vmor %vm1155, %vm1156
    %v1158 = vsel %vm1157, %v1150, %v1154
    %v1159 = vand.u32 2147483647, %v1147
    %vm1160 = vcmp.eq.f32.partialorder %v1159, 8.507059e+37
    %v1161 = vand.u32 %v1147, 2147483648
    %v1162 = vor.u32 1.1754944e-38, %v1161
    %v1163 = vsel %vm1160, %v1162, %v1158
    %v1164 = vmul.f32 1.0, %v1163
    %v1165 = vrcp.pop %v1148
    %v1166 = vmul.f32 %v1148, %v1165
    %v1167 = vsub.f32 1.0, %v1166
    %v1168 = vmul.f32 %v1165, %v1167
    %v1169 = vadd.f32 %v1165, %v1168
    %vm1170 = vweird.f32 %v1148
    %vm1171 = vweird.f32 %v1165
    %vm1172 = vmor %vm1170, %vm1171
    %v1173 = vsel %vm1172, %v1165, %v1169
    %v1174 = vand.u32 2147483647, %v1148
    %vm1175 = vcmp.eq.f32.partialorder %v1174, 8.507059e+37
    %v1176 = vand.u32 %v1148, 2147483648
    %v1177 = vor.u32 1.1754944e-38, %v1176
    %v1178 = vsel %vm1175, %v1177, %v1173
    %v1179 = vmul.f32 1.0, %v1178
    %v1180 = vrcp.pop %v1149
    %v1181 = vmul.f32 %v1149, %v1180
    %v1182 = vsub.f32 1.0, %v1181
    %v1183 = vmul.f32 %v1180, %v1182
    %v1184 = vadd.f32 %v1180, %v1183
    %vm1185 = vweird.f32 %v1149
    %vm1186 = vweird.f32 %v1180
    %vm1187 = vmor %vm1185, %vm1186
    %v1188 = vsel %vm1187, %v1180, %v1184
    %v1189 = vand.u32 2147483647, %v1149
    %vm1190 = vcmp.eq.f32.partialorder %v1189, 8.507059e+37
    %v1191 = vand.u32 %v1149, 2147483648
    %v1192 = vor.u32 1.1754944e-38, %v1191
    %v1193 = vsel %vm1190, %v1192, %v1188
    %v1194 = vmul.f32 1.0, %v1193
    %v1195 = vmul.f32 %v163, %v1164
    %v1196 = vmul.f32 %v183, %v1179
    %v1197 = vmul.f32 %v203, %v1194
    %v1198 = vperm.slane %v1195, 0
    %v1199 = vperm.slane %v1196, 0
    %v1200 = vperm.slane %v1197, 0
    %v1201 = vmul.f32 %v1057, %v1198
    %v1202 = vmul.f32 %v1058, %v1199
    %v1203 = vmul.f32 %v1059, %v1200
    %v1204 = vmul.f32 %v1060, %v1198
    %v1205 = vmul.f32 %v1061, %v1199
    %v1206 = vmul.f32 %v1062, %v1200
    %v1207 = vmul.f32 %v1063, %v1198
    %v1208 = vmul.f32 %v1064, %v1199
    %v1209 = vmul.f32 %v1065, %v1200
    %v1210 = vmul.f32 %v1066, %v1198
    %v1211 = vmul.f32 %v1067, %v1199
    %v1212 = vmul.f32 %v1068, %v1200
    %v1213 = vperm.slane %v163, 1
    %v1214 = vperm.slane %v183, 1
    %v1215 = vperm.slane %v203, 1
    %v1216 = vadd.f32 %v1201, %v1213
    %v1217 = vadd.f32 %v1202, %v1214
    %v1218 = vadd.f32 %v1203, %v1215
    %v1219 = vadd.f32 %v1204, %v1213
    %v1220 = vadd.f32 %v1205, %v1214
    %v1221 = vadd.f32 %v1206, %v1215
    %v1222 = vadd.f32 %v1207, %v1213
    %v1223 = vadd.f32 %v1208, %v1214
    %v1224 = vadd.f32 %v1209, %v1215
    %v1225 = vadd.f32 %v1210, %v1213
    %v1226 = vadd.f32 %v1211, %v1214
    %v1227 = vadd.f32 %v1212, %v1215
    %s1228 = scalar_lea.vmem %s7, 64
    %v1229 = vld [vmem:[%s1228] sm:$0xff]
    %v1230 = vld [vmem:[%s1228 + $0x8] sm:$0xff]
    %v1231 = vld [vmem:[%s1228 + $0x10] sm:$0xff]
    %v1232 = vld [vmem:[%s1228 + $0x18] sm:$0xff]
    %s1233 = scalar_lea.vmem %s8, 64
    %v1234 = vld [vmem:[%s1233] sm:$0xff]
    %v1235 = vld [vmem:[%s1233 + $0x8] sm:$0xff]
    %v1236 = vld [vmem:[%s1233 + $0x10] sm:$0xff]
    %v1237 = vld [vmem:[%s1233 + $0x18] sm:$0xff]
    %1239 = vset.pattern.permute.xlu0 0
    %1240 = vperm.xlu0 %1239, %v1234
    %v1241 = vpop.permute.xlu0 %1240
    %1244 = vset.pattern.permute.xlu0 0
    %1245 = vperm.xlu0 %1244, %v1235
    %v1246 = vpop.permute.xlu0 %1245
    %1249 = vset.pattern.permute.xlu0 0
    %1250 = vperm.xlu0 %1249, %v1236
    %v1251 = vpop.permute.xlu0 %1250
    %1254 = vset.pattern.permute.xlu0 0
    %1255 = vperm.xlu0 %1254, %v1237
    %v1256 = vpop.permute.xlu0 %1255
    %v1259 = vsel %vm573, %v1229, 0
    %v1262 = vsel %vm573, %v1230, 0
    %v1265 = vsel %vm573, %v1231, 0
    %v1268 = vsel %vm573, %v1232, 0
    %1270 = vmatpush.msra.mxu0 0.0
    %1271 = vmatpush.msra.mxu0 0.0
    %1272 = vmatpush.msra.mxu0 0.0
    %1273 = vmatpush.msra.mxu0 0.0
    %1274 = vmatpush.msra.mxu0 0.0
    %1275 = vmatpush.msra.mxu0 0.0
    %1276 = vmatpush.msra.mxu0 0.0
    %1277 = vmatpush.msra.mxu0 0.0
    %1278 = vmatpush.msra.mxu0 0.0
    %1279 = vmatpush.msra.mxu0 0.0
    %1280 = vmatpush.msra.mxu0 0.0
    %1281 = vmatpush.msra.mxu0 0.0
    %1282 = vmatpush.msra.mxu0 %v1225
    %1283 = vmatpush.msra.mxu0 %v1222
    %1284 = vmatpush.msra.mxu0 %v1219
    %1285 = vmatpush.msra.mxu0 %v1216
    %1286 = vmatmul.f32.gmra.mxu0 %v1259
    %v1287 = vpop.f32.mrf.mxu0
    %v1288 = vadd.f32 %v1241, %v1287
    %1289 = vmatmul.f32.gmra.mxu0 %v1262
    %v1290 = vpop.f32.mrf.mxu0
    %v1291 = vadd.f32 %v1246, %v1290
    %1292 = vmatmul.f32.gmra.mxu0 %v1265
    %v1293 = vpop.f32.mrf.mxu0
    %v1294 = vadd.f32 %v1251, %v1293
    %1295 = vmatmul.f32.gmra.mxu0 %v1268
    %v1296 = vpop.f32.mrf.mxu0
    %v1297 = vadd.f32 %v1256, %v1296
    %1298 = vdwg.mxu0
    %1299 = vmatpush.msra.mxu0 0.0
    %1300 = vmatpush.msra.mxu0 0.0
    %1301 = vmatpush.msra.mxu0 0.0
    %1302 = vmatpush.msra.mxu0 0.0
    %1303 = vmatpush.msra.mxu0 0.0
    %1304 = vmatpush.msra.mxu0 0.0
    %1305 = vmatpush.msra.mxu0 0.0
    %1306 = vmatpush.msra.mxu0 0.0
    %1307 = vmatpush.msra.mxu0 0.0
    %1308 = vmatpush.msra.mxu0 0.0
    %1309 = vmatpush.msra.mxu0 0.0
    %1310 = vmatpush.msra.mxu0 0.0
    %1311 = vmatpush.msra.mxu0 %v1226
    %1312 = vmatpush.msra.mxu0 %v1223
    %1313 = vmatpush.msra.mxu0 %v1220
    %1314 = vmatpush.msra.mxu0 %v1217
    %1315 = vmatmul.f32.gmra.mxu0 %v1259
    %v1316 = vpop.f32.mrf.mxu0
    %v1317 = vadd.f32 %v1241, %v1316
    %1318 = vmatmul.f32.gmra.mxu0 %v1262
    %v1319 = vpop.f32.mrf.mxu0
    %v1320 = vadd.f32 %v1246, %v1319
    %1321 = vmatmul.f32.gmra.mxu0 %v1265
    %v1322 = vpop.f32.mrf.mxu0
    %v1323 = vadd.f32 %v1251, %v1322
    %1324 = vmatmul.f32.gmra.mxu0 %v1268
    %v1325 = vpop.f32.mrf.mxu0
    %v1326 = vadd.f32 %v1256, %v1325
    %1327 = vdwg.mxu0
    %1328 = vmatpush.msra.mxu0 0.0
    %1329 = vmatpush.msra.mxu0 0.0
    %1330 = vmatpush.msra.mxu0 0.0
    %1331 = vmatpush.msra.mxu0 0.0
    %1332 = vmatpush.msra.mxu0 0.0
    %1333 = vmatpush.msra.mxu0 0.0
    %1334 = vmatpush.msra.mxu0 0.0
    %1335 = vmatpush.msra.mxu0 0.0
    %1336 = vmatpush.msra.mxu0 0.0
    %1337 = vmatpush.msra.mxu0 0.0
    %1338 = vmatpush.msra.mxu0 0.0
    %1339 = vmatpush.msra.mxu0 0.0
    %1340 = vmatpush.msra.mxu0 %v1227
    %1341 = vmatpush.msra.mxu0 %v1224
    %1342 = vmatpush.msra.mxu0 %v1221
    %1343 = vmatpush.msra.mxu0 %v1218
    %1344 = vmatmul.f32.gmra.mxu0 %v1259
    %v1345 = vpop.f32.mrf.mxu0
    %v1346 = vadd.f32 %v1241, %v1345
    %1347 = vmatmul.f32.gmra.mxu0 %v1262
    %v1348 = vpop.f32.mrf.mxu0
    %v1349 = vadd.f32 %v1246, %v1348
    %1350 = vmatmul.f32.gmra.mxu0 %v1265
    %v1351 = vpop.f32.mrf.mxu0
    %v1352 = vadd.f32 %v1251, %v1351
    %1353 = vmatmul.f32.gmra.mxu0 %v1268
    %v1354 = vpop.f32.mrf.mxu0
    %v1355 = vadd.f32 %v1256, %v1354
    %1356 = vdwg.mxu0
    %v1357 = vmax.f32 %v1288, 0.0
    %v1358 = vmax.f32 %v1317, 0.0
    %v1359 = vmax.f32 %v1346, 0.0
    %v1360 = vmax.f32 %v1291, 0.0
    %v1361 = vmax.f32 %v1320, 0.0
    %v1362 = vmax.f32 %v1349, 0.0
    %v1363 = vmax.f32 %v1294, 0.0
    %v1364 = vmax.f32 %v1323, 0.0
    %v1365 = vmax.f32 %v1352, 0.0
    %v1366 = vmax.f32 %v1297, 0.0
    %v1367 = vmax.f32 %v1326, 0.0
    %v1368 = vmax.f32 %v1355, 0.0
    %v1369 = vadd.f32 %v1357, %v1360
    %v1370 = vadd.f32 %v1369, %v1363
    %v1371 = vadd.f32 %v1370, %v1366
    %v1372 = vrot.slane %v1371, 4
    %v1373 = vadd.f32 %v1371, %v1372
    %v1374 = vrot.slane %v1373, 2
    %v1375 = vadd.f32 %v1373, %v1374
    %v1376 = vrot.slane %v1375, 1
    %v1377 = vadd.f32 %v1375, %v1376
    %v1378 = vadd.f32 %v1358, %v1361
    %v1379 = vadd.f32 %v1378, %v1364
    %v1380 = vadd.f32 %v1379, %v1367
    %v1381 = vrot.slane %v1380, 4
    %v1382 = vadd.f32 %v1380, %v1381
    %v1383 = vrot.slane %v1382, 2
    %v1384 = vadd.f32 %v1382, %v1383
    %v1385 = vrot.slane %v1384, 1
    %v1386 = vadd.f32 %v1384, %v1385
    %v1387 = vadd.f32 %v1359, %v1362
    %v1388 = vadd.f32 %v1387, %v1365
    %v1389 = vadd.f32 %v1388, %v1368
    %v1390 = vrot.slane %v1389, 4
    %v1391 = vadd.f32 %v1389, %v1390
    %v1392 = vrot.slane %v1391, 2
    %v1393 = vadd.f32 %v1391, %v1392
    %v1394 = vrot.slane %v1393, 1
    %v1395 = vadd.f32 %v1393, %v1394
    %v1396 = vmul.f32 %v1377, 0.03125
    %v1397 = vmul.f32 %v1386, 0.03125
    %v1398 = vmul.f32 %v1395, 0.03125
    %v1399 = vsub.f32 %v1357, %v1396
    %v1400 = vsub.f32 %v1358, %v1397
    %v1401 = vsub.f32 %v1359, %v1398
    %v1402 = vsub.f32 %v1360, %v1396
    %v1403 = vsub.f32 %v1361, %v1397
    %v1404 = vsub.f32 %v1362, %v1398
    %v1405 = vsub.f32 %v1363, %v1396
    %v1406 = vsub.f32 %v1364, %v1397
    %v1407 = vsub.f32 %v1365, %v1398
    %v1408 = vsub.f32 %v1366, %v1396
    %v1409 = vsub.f32 %v1367, %v1397
    %v1410 = vsub.f32 %v1368, %v1398
    %v1411 = vmul.f32 %v1399, %v1399
    %v1412 = vmul.f32 %v1400, %v1400
    %v1413 = vmul.f32 %v1401, %v1401
    %v1414 = vmul.f32 %v1402, %v1402
    %v1415 = vmul.f32 %v1403, %v1403
    %v1416 = vmul.f32 %v1404, %v1404
    %v1417 = vmul.f32 %v1405, %v1405
    %v1418 = vmul.f32 %v1406, %v1406
    %v1419 = vmul.f32 %v1407, %v1407
    %v1420 = vmul.f32 %v1408, %v1408
    %v1421 = vmul.f32 %v1409, %v1409
    %v1422 = vmul.f32 %v1410, %v1410
    %v1423 = vadd.f32 %v1411, %v1414
    %v1424 = vadd.f32 %v1423, %v1417
    %v1425 = vadd.f32 %v1424, %v1420
    %v1426 = vrot.slane %v1425, 4
    %v1427 = vadd.f32 %v1425, %v1426
    %v1428 = vrot.slane %v1427, 2
    %v1429 = vadd.f32 %v1427, %v1428
    %v1430 = vrot.slane %v1429, 1
    %v1431 = vadd.f32 %v1429, %v1430
    %v1432 = vadd.f32 %v1412, %v1415
    %v1433 = vadd.f32 %v1432, %v1418
    %v1434 = vadd.f32 %v1433, %v1421
    %v1435 = vrot.slane %v1434, 4
    %v1436 = vadd.f32 %v1434, %v1435
    %v1437 = vrot.slane %v1436, 2
    %v1438 = vadd.f32 %v1436, %v1437
    %v1439 = vrot.slane %v1438, 1
    %v1440 = vadd.f32 %v1438, %v1439
    %v1441 = vadd.f32 %v1413, %v1416
    %v1442 = vadd.f32 %v1441, %v1419
    %v1443 = vadd.f32 %v1442, %v1422
    %v1444 = vrot.slane %v1443, 4
    %v1445 = vadd.f32 %v1443, %v1444
    %v1446 = vrot.slane %v1445, 2
    %v1447 = vadd.f32 %v1445, %v1446
    %v1448 = vrot.slane %v1447, 1
    %v1449 = vadd.f32 %v1447, %v1448
    %v1450 = vmul.f32 %v1431, 0.032258064
    %v1451 = vmul.f32 %v1440, 0.032258064
    %v1452 = vmul.f32 %v1449, 0.032258064
    %v1453 = vrsqrt.pop %v1450
    %v1454 = vmul.f32 %v1453, %v1450
    %v1455 = vmul.f32 %v1454, %v1453
    %v1456 = vmul.f32 0.5, %v1455
    %v1457 = vsub.f32 1.5, %v1456
    %v1458 = vmul.f32 %v1453, %v1457
    %v1459 = vmul.f32 %v1450, %v1458
    %vm1460 = vcmp.eq.f32.partialorder %v1450, inf
    %v1461 = vsel %vm1460, %v1450, %v1459
    %vm1462 = vcmp.eq.f32.partialorder %v1450, 0.0
    %v1463 = vand.u32 %v1450, 2147483648
    %v1464 = vsel %vm1462, %v1463, %v1461
    %v1465 = vrsqrt.pop %v1451
    %v1466 = vmul.f32 %v1465, %v1451
    %v1467 = vmul.f32 %v1466, %v1465
    %v1468 = vmul.f32 0.5, %v1467
    %v1469 = vsub.f32 1.5, %v1468
    %v1470 = vmul.f32 %v1465, %v1469
    %v1471 = vmul.f32 %v1451, %v1470
    %vm1472 = vcmp.eq.f32.partialorder %v1451, inf
    %v1473 = vsel %vm1472, %v1451, %v1471
    %vm1474 = vcmp.eq.f32.partialorder %v1451, 0.0
    %v1475 = vand.u32 %v1451, 2147483648
    %v1476 = vsel %vm1474, %v1475, %v1473
    %v1477 = vrsqrt.pop %v1452
    %v1478 = vmul.f32 %v1477, %v1452
    %v1479 = vmul.f32 %v1478, %v1477
    %v1480 = vmul.f32 0.5, %v1479
    %v1481 = vsub.f32 1.5, %v1480
    %v1482 = vmul.f32 %v1477, %v1481
    %v1483 = vmul.f32 %v1452, %v1482
    %vm1484 = vcmp.eq.f32.partialorder %v1452, inf
    %v1485 = vsel %vm1484, %v1452, %v1483
    %vm1486 = vcmp.eq.f32.partialorder %v1452, 0.0
    %v1487 = vand.u32 %v1452, 2147483648
    %v1488 = vsel %vm1486, %v1487, %v1485
    %v1489 = vadd.f32 %v1464, 1e-06
    %v1490 = vadd.f32 %v1476, 1e-06
    %v1491 = vadd.f32 %v1488, 1e-06
    %v1492 = vrcp.pop %v1489
    %v1493 = vmul.f32 %v1489, %v1492
    %v1494 = vsub.f32 1.0, %v1493
    %v1495 = vmul.f32 %v1492, %v1494
    %v1496 = vadd.f32 %v1492, %v1495
    %vm1497 = vweird.f32 %v1489
    %vm1498 = vweird.f32 %v1492
    %vm1499 = vmor %vm1497, %vm1498
    %v1500 = vsel %vm1499, %v1492, %v1496
    %v1501 = vand.u32 2147483647, %v1489
    %vm1502 = vcmp.eq.f32.partialorder %v1501, 8.507059e+37
    %v1503 = vand.u32 %v1489, 2147483648
    %v1504 = vor.u32 1.1754944e-38, %v1503
    %v1505 = vsel %vm1502, %v1504, %v1500
    %v1506 = vmul.f32 1.0, %v1505
    %v1507 = vrcp.pop %v1490
    %v1508 = vmul.f32 %v1490, %v1507
    %v1509 = vsub.f32 1.0, %v1508
    %v1510 = vmul.f32 %v1507, %v1509
    %v1511 = vadd.f32 %v1507, %v1510
    %vm1512 = vweird.f32 %v1490
    %vm1513 = vweird.f32 %v1507
    %vm1514 = vmor %vm1512, %vm1513
    %v1515 = vsel %vm1514, %v1507, %v1511
    %v1516 = vand.u32 2147483647, %v1490
    %vm1517 = vcmp.eq.f32.partialorder %v1516, 8.507059e+37
    %v1518 = vand.u32 %v1490, 2147483648
    %v1519 = vor.u32 1.1754944e-38, %v1518
    %v1520 = vsel %vm1517, %v1519, %v1515
    %v1521 = vmul.f32 1.0, %v1520
    %v1522 = vrcp.pop %v1491
    %v1523 = vmul.f32 %v1491, %v1522
    %v1524 = vsub.f32 1.0, %v1523
    %v1525 = vmul.f32 %v1522, %v1524
    %v1526 = vadd.f32 %v1522, %v1525
    %vm1527 = vweird.f32 %v1491
    %vm1528 = vweird.f32 %v1522
    %vm1529 = vmor %vm1527, %vm1528
    %v1530 = vsel %vm1529, %v1522, %v1526
    %v1531 = vand.u32 2147483647, %v1491
    %vm1532 = vcmp.eq.f32.partialorder %v1531, 8.507059e+37
    %v1533 = vand.u32 %v1491, 2147483648
    %v1534 = vor.u32 1.1754944e-38, %v1533
    %v1535 = vsel %vm1532, %v1534, %v1530
    %v1536 = vmul.f32 1.0, %v1535
    %v1537 = vmul.f32 %v163, %v1506
    %v1538 = vmul.f32 %v183, %v1521
    %v1539 = vmul.f32 %v203, %v1536
    %v1540 = vperm.slane %v1537, 2
    %v1541 = vperm.slane %v1538, 2
    %v1542 = vperm.slane %v1539, 2
    %v1543 = vmul.f32 %v1399, %v1540
    %v1544 = vmul.f32 %v1400, %v1541
    %v1545 = vmul.f32 %v1401, %v1542
    %v1546 = vmul.f32 %v1402, %v1540
    %v1547 = vmul.f32 %v1403, %v1541
    %v1548 = vmul.f32 %v1404, %v1542
    %v1549 = vmul.f32 %v1405, %v1540
    %v1550 = vmul.f32 %v1406, %v1541
    %v1551 = vmul.f32 %v1407, %v1542
    %v1552 = vmul.f32 %v1408, %v1540
    %v1553 = vmul.f32 %v1409, %v1541
    %v1554 = vmul.f32 %v1410, %v1542
    %v1555 = vperm.slane %v163, 3
    %v1556 = vperm.slane %v183, 3
    %v1557 = vperm.slane %v203, 3
    %v1558 = vadd.f32 %v1543, %v1555
    %v1559 = vadd.f32 %v1544, %v1556
    %v1560 = vadd.f32 %v1545, %v1557
    %v1561 = vadd.f32 %v1546, %v1555
    %v1562 = vadd.f32 %v1547, %v1556
    %v1563 = vadd.f32 %v1548, %v1557
    %v1564 = vadd.f32 %v1549, %v1555
    %v1565 = vadd.f32 %v1550, %v1556
    %v1566 = vadd.f32 %v1551, %v1557
    %v1567 = vadd.f32 %v1552, %v1555
    %v1568 = vadd.f32 %v1553, %v1556
    %v1569 = vadd.f32 %v1554, %v1557
    %v1570 = vld [vmem:[%s9] sm:$0xf]
    %v1571 = vld [vmem:[%s10] sm:$0xf]
    %1573 = vset.pattern.permute.xlu0 0
    %1574 = vperm.xlu0 %1573, %v1571
    %v1575 = vpop.permute.xlu0 %1574
    %v1578 = vsel %vm573, %v1570, 0
    %1580 = vmatpush.msra.mxu0 0.0
    %1581 = vmatpush.msra.mxu0 0.0
    %1582 = vmatpush.msra.mxu0 0.0
    %1583 = vmatpush.msra.mxu0 0.0
    %1584 = vmatpush.msra.mxu0 0.0
    %1585 = vmatpush.msra.mxu0 0.0
    %1586 = vmatpush.msra.mxu0 0.0
    %1587 = vmatpush.msra.mxu0 0.0
    %1588 = vmatpush.msra.mxu0 0.0
    %1589 = vmatpush.msra.mxu0 0.0
    %1590 = vmatpush.msra.mxu0 0.0
    %1591 = vmatpush.msra.mxu0 0.0
    %1592 = vmatpush.msra.mxu0 %v1567
    %1593 = vmatpush.msra.mxu0 %v1564
    %1594 = vmatpush.msra.mxu0 %v1561
    %1595 = vmatpush.msra.mxu0 %v1558
    %1596 = vmatmul.f32.gmra.mxu0 %v1578
    %v1597 = vpop.f32.mrf.mxu0
    %v1598 = vadd.f32 %v1575, %v1597
    %1599 = vdwg.mxu0
    %1600 = vmatpush.msra.mxu0 0.0
    %1601 = vmatpush.msra.mxu0 0.0
    %1602 = vmatpush.msra.mxu0 0.0
    %1603 = vmatpush.msra.mxu0 0.0
    %1604 = vmatpush.msra.mxu0 0.0
    %1605 = vmatpush.msra.mxu0 0.0
    %1606 = vmatpush.msra.mxu0 0.0
    %1607 = vmatpush.msra.mxu0 0.0
    %1608 = vmatpush.msra.mxu0 0.0
    %1609 = vmatpush.msra.mxu0 0.0
    %1610 = vmatpush.msra.mxu0 0.0
    %1611 = vmatpush.msra.mxu0 0.0
    %1612 = vmatpush.msra.mxu0 %v1568
    %1613 = vmatpush.msra.mxu0 %v1565
    %1614 = vmatpush.msra.mxu0 %v1562
    %1615 = vmatpush.msra.mxu0 %v1559
    %1616 = vmatmul.f32.gmra.mxu0 %v1578
    %v1617 = vpop.f32.mrf.mxu0
    %v1618 = vadd.f32 %v1575, %v1617
    %1619 = vdwg.mxu0
    %1620 = vmatpush.msra.mxu0 0.0
    %1621 = vmatpush.msra.mxu0 0.0
    %1622 = vmatpush.msra.mxu0 0.0
    %1623 = vmatpush.msra.mxu0 0.0
    %1624 = vmatpush.msra.mxu0 0.0
    %1625 = vmatpush.msra.mxu0 0.0
    %1626 = vmatpush.msra.mxu0 0.0
    %1627 = vmatpush.msra.mxu0 0.0
    %1628 = vmatpush.msra.mxu0 0.0
    %1629 = vmatpush.msra.mxu0 0.0
    %1630 = vmatpush.msra.mxu0 0.0
    %1631 = vmatpush.msra.mxu0 0.0
    %1632 = vmatpush.msra.mxu0 %v1569
    %1633 = vmatpush.msra.mxu0 %v1566
    %1634 = vmatpush.msra.mxu0 %v1563
    %1635 = vmatpush.msra.mxu0 %v1560
    %1636 = vmatmul.f32.gmra.mxu0 %v1578
    %v1637 = vpop.f32.mrf.mxu0
    %v1638 = vadd.f32 %v1575, %v1637
    %1639 = vdwg.mxu0
    %v1640 = vxor.u32 %v1598, 2147483648
    %v1641 = vxor.u32 %v1618, 2147483648
    %v1642 = vxor.u32 %v1638, 2147483648
    %v1643 = vmul.f32 %v1640, 1.442695
    %v1644 = vpow.pop %v1643
    %v1645 = vmul.f32 %v1641, 1.442695
    %v1646 = vpow.pop %v1645
    %v1647 = vmul.f32 %v1642, 1.442695
    %v1648 = vpow.pop %v1647
    %v1649 = vadd.f32 %v1644, 1.0
    %v1650 = vadd.f32 %v1646, 1.0
    %v1651 = vadd.f32 %v1648, 1.0
    %v1652 = vrcp.pop %v1649
    %v1653 = vmul.f32 %v1649, %v1652
    %v1654 = vsub.f32 1.0, %v1653
    %v1655 = vmul.f32 %v1652, %v1654
    %v1656 = vadd.f32 %v1652, %v1655
    %vm1657 = vweird.f32 %v1649
    %vm1658 = vweird.f32 %v1652
    %vm1659 = vmor %vm1657, %vm1658
    %v1660 = vsel %vm1659, %v1652, %v1656
    %v1661 = vand.u32 2147483647, %v1649
    %vm1662 = vcmp.eq.f32.partialorder %v1661, 8.507059e+37
    %v1663 = vand.u32 %v1649, 2147483648
    %v1664 = vor.u32 1.1754944e-38, %v1663
    %v1665 = vsel %vm1662, %v1664, %v1660
    %v1666 = vmul.f32 1.0, %v1665
    %v1667 = vrcp.pop %v1650
    %v1668 = vmul.f32 %v1650, %v1667
    %v1669 = vsub.f32 1.0, %v1668
    %v1670 = vmul.f32 %v1667, %v1669
    %v1671 = vadd.f32 %v1667, %v1670
    %vm1672 = vweird.f32 %v1650
    %vm1673 = vweird.f32 %v1667
    %vm1674 = vmor %vm1672, %vm1673
    %v1675 = vsel %vm1674, %v1667, %v1671
    %v1676 = vand.u32 2147483647, %v1650
    %vm1677 = vcmp.eq.f32.partialorder %v1676, 8.507059e+37
    %v1678 = vand.u32 %v1650, 2147483648
    %v1679 = vor.u32 1.1754944e-38, %v1678
    %v1680 = vsel %vm1677, %v1679, %v1675
    %v1681 = vmul.f32 1.0, %v1680
    %v1682 = vrcp.pop %v1651
    %v1683 = vmul.f32 %v1651, %v1682
    %v1684 = vsub.f32 1.0, %v1683
    %v1685 = vmul.f32 %v1682, %v1684
    %v1686 = vadd.f32 %v1682, %v1685
    %vm1687 = vweird.f32 %v1651
    %vm1688 = vweird.f32 %v1682
    %vm1689 = vmor %vm1687, %vm1688
    %v1690 = vsel %vm1689, %v1682, %v1686
    %v1691 = vand.u32 2147483647, %v1651
    %vm1692 = vcmp.eq.f32.partialorder %v1691, 8.507059e+37
    %v1693 = vand.u32 %v1651, 2147483648
    %v1694 = vor.u32 1.1754944e-38, %v1693
    %v1695 = vsel %vm1692, %v1694, %v1690
    %v1696 = vmul.f32 1.0, %v1695
    %vm1697 = vcmask 1042432
    %v1698 = vsel %vm1697, %v1598, %v1666
    %v1699 = vsel %vm1697, %v1618, %v1681
    %v1700 = vsel %vm1697, %v1638, %v1696
    %v1703 = vrot.slane %v1699, 4
    %vm1704 = vcmask 1043456
    %v1705 = vsel %vm1704, %v1698, %v1703
    %1707 = vst [vmem:[#allocation5] sm:$0xff] %v1705
    %1708 = vst [vmem:[#allocation5 + $0x8] sm:$0xf] %v1700
    // Predicated region
    $region50: #{tpu_custom_call.1} parent=1 // pred_check
      _
    $region51: #{tpu_custom_call.1} parent=1 // pred_check_branch
      %1710 = sbr.rel (0) target = $region53
    $region52: #{tpu_custom_call.1} parent=1 // pred_region
      %1712 = vsyncadd [#allocation4], 0
      %s1714 = sshll.u32 [#allocation5], 4
      %s1715 = int_to_ptr.vmem [resolvable:$true] %s1714
      %s1716 = sshll.u32 %s11, 4
      %s1717 = int_to_ptr.hbm [resolvable:$true] %s1716
      %1719 = dma.vmem_to_hbm [thread:$0]  %s1715, 192, %s1717, [#allocation4]
    $region53: #{tpu_custom_call.1} parent=1 // pred_fallthru
      _
    // Predicated region
    $region54: #{tpu_custom_call.1} parent=1 // pred_check
      _
    $region55: #{tpu_custom_call.1} parent=1 // pred_check_branch
      %1721 = sbr.rel (0) target = $region57
    $region56: #{tpu_custom_call.1} parent=1 // pred_region
      %1723 = dma.done [#allocation4], 192
    $region57: #{tpu_custom_call.1} parent=1 // pred_fallthru
      _
    %1724 = vsyncpa [#allocation3], 1
    %1725 = vsyncpa [#allocation4], 1

</llo_original>
